<compile_context>
chip_gen: v7x
topology: tpu7x:2x2x1
jax: 0.10.0
libtpu: 0.0.40
codegen_flags: <defaults>
</compile_context>

<pallas_src>
import math
import functools

import jax
import jax.numpy as jnp
from jax import lax
from jax.experimental import pallas as pl
from jax.experimental.pallas import tpu as pltpu


_NEG_INF = float("-inf")


def _layernorm(h, g, b, eps=1e-5):
    mu = jnp.mean(h, axis=-1, keepdims=True)
    var = jnp.mean(jnp.square(h - mu), axis=-1, keepdims=True)
    return (h - mu) * lax.rsqrt(var + eps) * g + b


def _gelu_tanh(x):
    # GELU(approximate='tanh') as in PyTorch
    c = math.sqrt(2.0 / math.pi)
    return 0.5 * x * (1.0 + jnp.tanh(c * (x + 0.044715 * x * x * x)))


def _pick_mlp_chunk(hidden):
    """MLP hidden-dim tile width: full if small, else a 256-multiple divisor."""
    if hidden <= 1024:
        return hidden
    for cand in (1024, 512, 256):
        if hidden % cand == 0:
            return cand
    return hidden


def block_kernel(x_ref,
                 ln1g_ref, ln1b_ref,
                 wqkv_ref, bqkv_ref,
                 wo_ref, bo_ref,
                 ln2g_ref, ln2b_ref,
                 wfc_ref, bfc_ref,
                 wpr_ref, bpr_ref,
                 o_ref,
                 *, n_head, n_embd, seq_len, mlp_chunk):
    C = n_embd
    T = seq_len
    hd = C // n_head
    scale = 1.0 / math.sqrt(hd)
    cdt = wqkv_ref.dtype  # MXU compute dtype (bf16 params -> bf16 matmuls)

    x = x_ref[0].astype(jnp.float32)  # (T, C) — one batch element

    # ---- LayerNorm 1 + causal self-attention (all heads batched) ----
    h = _layernorm(x, ln1g_ref[...], ln1b_ref[...])
    qkv = (jnp.dot(h.astype(cdt), wqkv_ref[...],
                   preferred_element_type=jnp.float32) + bqkv_ref[...])  # (T, 3C)

    # Fold 1/sqrt(hd) into q (T*hd multiplies instead of T*T per head).
    q = (qkv[:, 0 * C:1 * C] * scale).reshape(T, n_head, hd)
    k = qkv[:, 1 * C:2 * C].reshape(T, n_head, hd)
    v = qkv[:, 2 * C:3 * C].reshape(T, n_head, hd)
    q = pltpu.einshape("thd->htd", q)  # (n_head, T, hd)
    k = pltpu.einshape("thd->htd", k)
    v = pltpu.einshape("thd->htd", v)

    # Causal mask built once, outside any loop (JAX does not CSE iota/broadcast).
    row = lax.broadcasted_iota(jnp.int32, (T, T), 0)
    col = lax.broadcasted_iota(jnp.int32, (T, T), 1)
    causal = row >= col  # (T, T), True where attention is allowed

    # Batched logits: (n_head, T, T).  Leading batch dim, no explicit kh.T.
    att = jnp.einsum("htd,hsd->hts", q, k, preferred_element_type=jnp.float32)
    att = jnp.where(causal, att, _NEG_INF)
    m = jnp.max(att, axis=-1, keepdims=True)
    p = jnp.exp(att - m)
    l = jnp.sum(p, axis=-1, keepdims=True)                       # (n_head, T, 1)
    acc = jnp.einsum("hts,hsd->htd", p, v,
                     preferred_element_type=jnp.float32)          # (n_head, T, hd)
    # Normalize the small (n_head, T, hd) output rather than the (T, T) P matrix.
    y = acc * pl.reciprocal(l, approx=False)
    y = pltpu.einshape("htd->thd", y).reshape(T, C)               # (T, C), no concat

    y = (jnp.dot(y.astype(cdt), wo_ref[...],
                 preferred_element_type=jnp.float32) + bo_ref[...])
    x = x + y  # residual 1

    # ---- LayerNorm 2 + MLP (hidden dim tiled) ----
    h2 = _layernorm(x, ln2g_ref[...], ln2b_ref[...]).astype(cdt)
    hidden = 4 * C

    if mlp_chunk >= hidden:
        fc = (jnp.dot(h2, wfc_ref[...],
                      preferred_element_type=jnp.float32) + bfc_ref[...])
        g = _gelu_tanh(fc)
        m_out = (jnp.dot(g.astype(cdt), wpr_ref[...],
                         preferred_element_type=jnp.float32) + bpr_ref[...])
    else:
        n_chunks = hidden // mlp_chunk

        def body(j, acc_m):
            j0 = pl.multiple_of(j * mlp_chunk, mlp_chunk)
            fc = (jnp.dot(h2, wfc_ref[:, pl.ds(j0, mlp_chunk)],
                          preferred_element_type=jnp.float32)
                  + bfc_ref[:, pl.ds(j0, mlp_chunk)])
            g = _gelu_tanh(fc).astype(cdt)
            return acc_m + jnp.dot(g, wpr_ref[pl.ds(j0, mlp_chunk), :],
                                   preferred_element_type=jnp.float32)

        init = jnp.broadcast_to(bpr_ref[...], (T, C)).astype(jnp.float32)
        m_out = lax.fori_loop(0, n_chunks, body, init)

    o_ref[0] = (x + m_out).astype(o_ref.dtype)  # residual 2


def gpt2_block(x, params, *, n_head):
    B, T, C = x.shape
    (ln1g, ln1b, wqkv, bqkv, wo, bo, ln2g, ln2b, wfc, bfc, wpr, bpr) = params
    weights = (ln1g, ln1b, wqkv, bqkv, wo, bo, ln2g, ln2b, wfc, bfc, wpr, bpr)

    mlp_chunk = _pick_mlp_chunk(4 * C)
    kernel = functools.partial(block_kernel, n_head=n_head, n_embd=C,
                               seq_len=T, mlp_chunk=mlp_chunk)

    def rep_spec(arr):
        # whole array, replicated (constant block index) across the batch grid
        return pl.BlockSpec(arr.shape, lambda b, _n=arr.ndim: (0,) * _n)

    # Explicit VMEM budget (weights double-buffered + activation intermediates),
    # clamped to stay inside every generation's physical VMEM (v7x: 64 MiB).
    f32 = 4
    hd = C // n_head
    w_bytes = sum(int(a.size) * a.dtype.itemsize for a in weights)
    act_bytes = f32 * (
        6 * T * C                    # x, h/h2, y, residual temps
        + T * 3 * C                  # qkv
        + 4 * n_head * T * hd        # head-major q, k, v, acc
        + 3 * n_head * T * T         # att, p, mask temp
        + 2 * T * mlp_chunk          # fc chunk + gelu chunk
    )
    io_bytes = 2 * 2 * T * C * x.dtype.itemsize  # in + out blocks, double-buffered
    est = 2 * w_bytes + act_bytes + io_bytes
    vmem_limit = int(min(max(est + est // 2, 32 * 1024 * 1024),
                         100 * 1024 * 1024))

    return pl.pallas_call(
        kernel,
        out_shape=jax.ShapeDtypeStruct((B, T, C), x.dtype),
        grid_spec=pltpu.PrefetchScalarGridSpec(
            num_scalar_prefetch=0,
            grid=(B,),
            in_specs=[pl.BlockSpec((1, T, C), lambda b: (b, 0, 0))]  # x
                     + [rep_spec(a) for a in weights],
            out_specs=pl.BlockSpec((1, T, C), lambda b: (b, 0, 0)),
        ),
        compiler_params=pltpu.CompilerParams(
            dimension_semantics=("parallel",),
            vmem_limit_bytes=vmem_limit),
    )(x, *weights)


def make_params(key, n_embd, dtype=jnp.float32):
    # Set dtype=jnp.bfloat16 to run the projection matmuls on the bf16 MXU path
    # (f32 accumulation is kept via preferred_element_type inside the kernel).
    C = n_embd
    keys = jax.random.split(key, 8)
    s = 0.02
    ln1g = jnp.ones((1, C), dtype)
    ln1b = jnp.zeros((1, C), dtype)
    wqkv = (s * jax.random.normal(keys[0], (C, 3 * C))).astype(dtype)
    bqkv = (s * jax.random.normal(keys[1], (1, 3 * C))).astype(dtype)
    wo = (s * jax.random.normal(keys[2], (C, C))).astype(dtype)
    bo = (s * jax.random.normal(keys[3], (1, C))).astype(dtype)
    ln2g = jnp.ones((1, C), dtype)
    ln2b = jnp.zeros((1, C), dtype)
    wfc = (s * jax.random.normal(keys[4], (C, 4 * C))).astype(dtype)
    bfc = (s * jax.random.normal(keys[5], (1, 4 * C))).astype(dtype)
    wpr = (s * jax.random.normal(keys[6], (4 * C, C))).astype(dtype)
    bpr = (s * jax.random.normal(keys[7], (1, C))).astype(dtype)
    return (ln1g, ln1b, wqkv, bqkv, wo, bo, ln2g, ln2b, wfc, bfc, wpr, bpr)


def reference_block(x, params, *, n_head):
    """Pure-JAX reference for correctness checking."""
    (ln1g, ln1b, wqkv, bqkv, wo, bo, ln2g, ln2b, wfc, bfc, wpr, bpr) = params
    B, T, C = x.shape
    hd = C // n_head

    h = _layernorm(x, ln1g, ln1b)
    qkv = h @ wqkv + bqkv
    q, k, v = jnp.split(qkv, 3, axis=-1)
    q = q.reshape(B, T, n_head, hd).transpose(0, 2, 1, 3)
    k = k.reshape(B, T, n_head, hd).transpose(0, 2, 1, 3)
    v = v.reshape(B, T, n_head, hd).transpose(0, 2, 1, 3)
    att = jnp.einsum("bhqd,bhkd->bhqk", q, k) / math.sqrt(hd)
    mask = jnp.tril(jnp.ones((T, T), bool))
    att = jnp.where(mask, att, -jnp.inf)
    att = jax.nn.softmax(att, axis=-1)
    y = jnp.einsum("bhqk,bhkd->bhqd", att, v)
    y = y.transpose(0, 2, 1, 3).reshape(B, T, C)
    x = x + (y @ wo + bo)
    h2 = _layernorm(x, ln2g, ln2b)
    m = _gelu_tanh(h2 @ wfc + bfc) @ wpr + bpr
    return x + m


if __name__ == "__main__":
    key = jax.random.PRNGKey(0)
    B, T, C, n_head = 2, 8, 32, 4

    k_x, k_p = jax.random.split(key)
    x = jax.random.normal(k_x, (B, T, C), dtype=jnp.float32)
    params = make_params(k_p, C, dtype=jnp.float32)

    out = gpt2_block(x, params, n_head=n_head)
    out = jax.block_until_ready(out)

    ref = reference_block(x, params, n_head=n_head)
    assert out.shape == (B, T, C)
    assert jnp.allclose(out, ref, atol=1e-4, rtol=1e-4), "mismatch vs reference"

    print("KERNEL_OK")
</pallas_src>

<mosaic_0001>
module attributes {stable_mosaic.version = 11 : i64} {
  func.func @block_kernel(%arg0: i32, %arg1: memref<1x8x32xf32, #tpu.memory_space<vmem>>, %arg2: memref<1x32xf32, #tpu.memory_space<vmem>>, %arg3: memref<1x32xf32, #tpu.memory_space<vmem>>, %arg4: memref<32x96xf32, #tpu.memory_space<vmem>>, %arg5: memref<1x96xf32, #tpu.memory_space<vmem>>, %arg6: memref<32x32xf32, #tpu.memory_space<vmem>>, %arg7: memref<1x32xf32, #tpu.memory_space<vmem>>, %arg8: memref<1x32xf32, #tpu.memory_space<vmem>>, %arg9: memref<1x32xf32, #tpu.memory_space<vmem>>, %arg10: memref<32x128xf32, #tpu.memory_space<vmem>>, %arg11: memref<1x128xf32, #tpu.memory_space<vmem>>, %arg12: memref<128x32xf32, #tpu.memory_space<vmem>>, %arg13: memref<1x32xf32, #tpu.memory_space<vmem>>, %arg14: memref<1x8x32xf32, #tpu.memory_space<vmem>>) attributes {dimension_semantics = [#tpu.dimension_semantics<parallel>], iteration_bounds = array<i64: 2>, scalar_prefetch = 0 : i64, scratch_operands = 0 : i64, tpu.core_type = #tpu.core_type<tc>, window_params = [{transform_indices = @transform_0, window_bounds = array<i64: 1, 8, 32>}, {pipeline_mode = #tpu.pipeline_mode<synchronous>, transform_indices = @transform_1, window_bounds = array<i64: 1, 32>}, {pipeline_mode = #tpu.pipeline_mode<synchronous>, transform_indices = @transform_2, window_bounds = array<i64: 1, 32>}, {pipeline_mode = #tpu.pipeline_mode<synchronous>, transform_indices = @transform_3, window_bounds = array<i64: 32, 96>}, {pipeline_mode = #tpu.pipeline_mode<synchronous>, transform_indices = @transform_4, window_bounds = array<i64: 1, 96>}, {pipeline_mode = #tpu.pipeline_mode<synchronous>, transform_indices = @transform_5, window_bounds = array<i64: 32, 32>}, {pipeline_mode = #tpu.pipeline_mode<synchronous>, transform_indices = @transform_6, window_bounds = array<i64: 1, 32>}, {pipeline_mode = #tpu.pipeline_mode<synchronous>, transform_indices = @transform_7, window_bounds = array<i64: 1, 32>}, {pipeline_mode = #tpu.pipeline_mode<synchronous>, transform_indices = @transform_8, window_bounds = array<i64: 1, 32>}, {pipeline_mode = #tpu.pipeline_mode<synchronous>, transform_indices = @transform_9, window_bounds = array<i64: 32, 128>}, {pipeline_mode = #tpu.pipeline_mode<synchronous>, transform_indices = @transform_10, window_bounds = array<i64: 1, 128>}, {pipeline_mode = #tpu.pipeline_mode<synchronous>, transform_indices = @transform_11, window_bounds = array<i64: 128, 32>}, {pipeline_mode = #tpu.pipeline_mode<synchronous>, transform_indices = @transform_12, window_bounds = array<i64: 1, 32>}, {transform_indices = @transform_13, window_bounds = array<i64: 1, 8, 32>}]} {
    %c0 = arith.constant 0 : index
    %c0_0 = arith.constant 0 : index
    %c0_1 = arith.constant 0 : index
    %0 = vector.load %arg1[%c0, %c0_0, %c0_1] : memref<1x8x32xf32, #tpu.memory_space<vmem>>, vector<1x8x32xf32>
    %1 = vector.shape_cast %0 : vector<1x8x32xf32> to vector<8x32xf32>
    %c0_2 = arith.constant 0 : index
    %c0_3 = arith.constant 0 : index
    %2 = vector.load %arg2[%c0_2, %c0_3] : memref<1x32xf32, #tpu.memory_space<vmem>>, vector<1x32xf32>
    %c0_4 = arith.constant 0 : index
    %c0_5 = arith.constant 0 : index
    %3 = vector.load %arg3[%c0_4, %c0_5] : memref<1x32xf32, #tpu.memory_space<vmem>>, vector<1x32xf32>
    %cst = arith.constant dense<0.000000e+00> : vector<8xf32>
    %4 = vector.multi_reduction <add>, %1, %cst [1] : vector<8x32xf32> to vector<8xf32>
    %5 = vector.shape_cast %4 : vector<8xf32> to vector<8x1xf32>
    %cst_6 = arith.constant 3.200000e+01 : f32
    %6 = vector.broadcast %cst_6 : f32 to vector<8x1xf32>
    %7 = arith.divf %5, %6 : vector<8x1xf32>
    %8 = vector.broadcast %7 : vector<8x1xf32> to vector<8x32xf32>
    %9 = arith.subf %1, %8 : vector<8x32xf32>
    %10 = arith.mulf %9, %9 : vector<8x32xf32>
    %cst_7 = arith.constant dense<0.000000e+00> : vector<8xf32>
    %11 = vector.multi_reduction <add>, %10, %cst_7 [1] : vector<8x32xf32> to vector<8xf32>
    %12 = vector.shape_cast %11 : vector<8xf32> to vector<8x1xf32>
    %cst_8 = arith.constant 3.200000e+01 : f32
    %13 = vector.broadcast %cst_8 : f32 to vector<8x1xf32>
    %14 = arith.divf %12, %13 : vector<8x1xf32>
    %15 = vector.broadcast %7 : vector<8x1xf32> to vector<8x32xf32>
    %16 = arith.subf %1, %15 : vector<8x32xf32>
    %cst_9 = arith.constant 9.99999974E-6 : f32
    %17 = vector.broadcast %cst_9 : f32 to vector<8x1xf32>
    %18 = arith.addf %14, %17 : vector<8x1xf32>
    %19 = math.rsqrt %18 : vector<8x1xf32>
    %20 = vector.broadcast %19 : vector<8x1xf32> to vector<8x32xf32>
    %21 = arith.mulf %16, %20 : vector<8x32xf32>
    %22 = vector.broadcast %2 : vector<1x32xf32> to vector<8x32xf32>
    %23 = arith.mulf %21, %22 : vector<8x32xf32>
    %24 = vector.broadcast %3 : vector<1x32xf32> to vector<8x32xf32>
    %25 = arith.addf %23, %24 : vector<8x32xf32>
    %c0_10 = arith.constant 0 : index
    %c0_11 = arith.constant 0 : index
    %26 = vector.load %arg4[%c0_10, %c0_11] : memref<32x96xf32, #tpu.memory_space<vmem>>, vector<32x96xf32>
    %cst_12 = arith.constant dense<0.000000e+00> : vector<8x96xf32>
    %27 = tpu.matmul %25, %26, %cst_12 {dimension_numbers = #tpu.dot_dimension_numbers<[1], [0], [0], [1], [0, 0, 1, 1], [], []>} : vector<8x32xf32>, vector<32x96xf32>, vector<8x96xf32> -> vector<8x96xf32>
    %c0_13 = arith.constant 0 : index
    %c0_14 = arith.constant 0 : index
    %28 = vector.load %arg5[%c0_13, %c0_14] : memref<1x96xf32, #tpu.memory_space<vmem>>, vector<1x96xf32>
    %29 = vector.broadcast %28 : vector<1x96xf32> to vector<8x96xf32>
    %30 = arith.addf %27, %29 : vector<8x96xf32>
    %31 = vector.extract_strided_slice %30 {offsets = [0, 0], sizes = [8, 32], strides = [1, 1]} : vector<8x96xf32> to vector<8x32xf32>
    %cst_15 = arith.constant 0.353553385 : f32
    %32 = vector.broadcast %cst_15 : f32 to vector<8x32xf32>
    %33 = arith.mulf %31, %32 : vector<8x32xf32>
    %34 = vector.shape_cast %33 : vector<8x32xf32> to vector<8x4x8xf32>
    %35 = vector.extract_strided_slice %30 {offsets = [0, 32], sizes = [8, 32], strides = [1, 1]} : vector<8x96xf32> to vector<8x32xf32>
    %36 = vector.shape_cast %35 : vector<8x32xf32> to vector<8x4x8xf32>
    %37 = vector.extract_strided_slice %30 {offsets = [0, 64], sizes = [8, 32], strides = [1, 1]} : vector<8x96xf32> to vector<8x32xf32>
    %38 = vector.shape_cast %37 : vector<8x32xf32> to vector<8x4x8xf32>
    %39 = tpu.transpose %34, [1, 0, 2] : vector<8x4x8xf32> -> vector<4x8x8xf32>
    %40 = tpu.transpose %36, [1, 0, 2] : vector<8x4x8xf32> -> vector<4x8x8xf32>
    %41 = tpu.transpose %38, [1, 0, 2] : vector<8x4x8xf32> -> vector<4x8x8xf32>
    %42 = tpu.iota {dimensions = array<i32: 0>} : vector<8x8xi32>
    %43 = tpu.iota {dimensions = array<i32: 1>} : vector<8x8xi32>
    %44 = arith.cmpi sge, %42, %43 : vector<8x8xi32>
    "tpu.trace_start"() <{level = 10 : i32, message = "htd,hsd->hts"}> : () -> ()
    %cst_16 = arith.constant dense<0.000000e+00> : vector<4x8x8xf32>
    %45 = tpu.matmul %39, %40, %cst_16 {dimension_numbers = #tpu.dot_dimension_numbers<[2], [2], [1], [1], [0, 0, 0, 1, 1, 1], [0], [0]>} : vector<4x8x8xf32>, vector<4x8x8xf32>, vector<4x8x8xf32> -> vector<4x8x8xf32>
    %cst_17 = arith.constant 0xFF800000 : f32
    "tpu.trace_stop"() : () -> ()
    %46 = vector.shape_cast %44 : vector<8x8xi1> to vector<1x8x8xi1>
    %47 = vector.broadcast %46 : vector<1x8x8xi1> to vector<4x8x8xi1>
    %48 = vector.broadcast %cst_17 : f32 to vector<4x8x8xf32>
    %49 = arith.select %47, %45, %48 : vector<4x8x8xi1>, vector<4x8x8xf32>
    %cst_18 = arith.constant dense<0xFF800000> : vector<4x8xf32>
    %50 = vector.multi_reduction <maximumf>, %49, %cst_18 [2] : vector<4x8x8xf32> to vector<4x8xf32>
    %51 = vector.shape_cast %50 : vector<4x8xf32> to vector<4x8x1xf32>
    %52 = vector.broadcast %51 : vector<4x8x1xf32> to vector<4x8x8xf32>
    %53 = arith.subf %49, %52 : vector<4x8x8xf32>
    %54 = math.exp %53 : vector<4x8x8xf32>
    %cst_19 = arith.constant dense<0.000000e+00> : vector<4x8xf32>
    %55 = vector.multi_reduction <add>, %54, %cst_19 [2] : vector<4x8x8xf32> to vector<4x8xf32>
    %56 = vector.shape_cast %55 : vector<4x8xf32> to vector<4x8x1xf32>
    "tpu.trace_start"() <{level = 10 : i32, message = "hts,hsd->htd"}> : () -> ()
    %cst_20 = arith.constant dense<0.000000e+00> : vector<4x8x8xf32>
    %57 = tpu.matmul %54, %41, %cst_20 {dimension_numbers = #tpu.dot_dimension_numbers<[2], [1], [1], [2], [0, 0, 0, 1, 1, 2], [0], [0]>} : vector<4x8x8xf32>, vector<4x8x8xf32>, vector<4x8x8xf32> -> vector<4x8x8xf32>
    "tpu.trace_stop"() : () -> ()
    %58 = tpu.reciprocal %56 : vector<4x8x1xf32> -> vector<4x8x1xf32>
    %59 = vector.broadcast %58 : vector<4x8x1xf32> to vector<4x8x8xf32>
    %60 = arith.mulf %57, %59 : vector<4x8x8xf32>
    %61 = tpu.transpose %60, [1, 0, 2] : vector<4x8x8xf32> -> vector<8x4x8xf32>
    %62 = vector.shape_cast %61 : vector<8x4x8xf32> to vector<8x32xf32>
    %c0_21 = arith.constant 0 : index
    %c0_22 = arith.constant 0 : index
    %63 = vector.load %arg6[%c0_21, %c0_22] : memref<32x32xf32, #tpu.memory_space<vmem>>, vector<32x32xf32>
    %cst_23 = arith.constant dense<0.000000e+00> : vector<8x32xf32>
    %64 = tpu.matmul %62, %63, %cst_23 {dimension_numbers = #tpu.dot_dimension_numbers<[1], [0], [0], [1], [0, 0, 1, 1], [], []>} : vector<8x32xf32>, vector<32x32xf32>, vector<8x32xf32> -> vector<8x32xf32>
    %c0_24 = arith.constant 0 : index
    %c0_25 = arith.constant 0 : index
    %65 = vector.load %arg7[%c0_24, %c0_25] : memref<1x32xf32, #tpu.memory_space<vmem>>, vector<1x32xf32>
    %66 = vector.broadcast %65 : vector<1x32xf32> to vector<8x32xf32>
    %67 = arith.addf %64, %66 : vector<8x32xf32>
    %68 = arith.addf %1, %67 : vector<8x32xf32>
    %c0_26 = arith.constant 0 : index
    %c0_27 = arith.constant 0 : index
    %69 = vector.load %arg8[%c0_26, %c0_27] : memref<1x32xf32, #tpu.memory_space<vmem>>, vector<1x32xf32>
    %c0_28 = arith.constant 0 : index
    %c0_29 = arith.constant 0 : index
    %70 = vector.load %arg9[%c0_28, %c0_29] : memref<1x32xf32, #tpu.memory_space<vmem>>, vector<1x32xf32>
    %cst_30 = arith.constant dense<0.000000e+00> : vector<8xf32>
    %71 = vector.multi_reduction <add>, %68, %cst_30 [1] : vector<8x32xf32> to vector<8xf32>
    %72 = vector.shape_cast %71 : vector<8xf32> to vector<8x1xf32>
    %cst_31 = arith.constant 3.200000e+01 : f32
    %73 = vector.broadcast %cst_31 : f32 to vector<8x1xf32>
    %74 = arith.divf %72, %73 : vector<8x1xf32>
    %75 = vector.broadcast %74 : vector<8x1xf32> to vector<8x32xf32>
    %76 = arith.subf %68, %75 : vector<8x32xf32>
    %77 = arith.mulf %76, %76 : vector<8x32xf32>
    %cst_32 = arith.constant dense<0.000000e+00> : vector<8xf32>
    %78 = vector.multi_reduction <add>, %77, %cst_32 [1] : vector<8x32xf32> to vector<8xf32>
    %79 = vector.shape_cast %78 : vector<8xf32> to vector<8x1xf32>
    %cst_33 = arith.constant 3.200000e+01 : f32
    %80 = vector.broadcast %cst_33 : f32 to vector<8x1xf32>
    %81 = arith.divf %79, %80 : vector<8x1xf32>
    %82 = vector.broadcast %74 : vector<8x1xf32> to vector<8x32xf32>
    %83 = arith.subf %68, %82 : vector<8x32xf32>
    %cst_34 = arith.constant 9.99999974E-6 : f32
    %84 = vector.broadcast %cst_34 : f32 to vector<8x1xf32>
    %85 = arith.addf %81, %84 : vector<8x1xf32>
    %86 = math.rsqrt %85 : vector<8x1xf32>
    %87 = vector.broadcast %86 : vector<8x1xf32> to vector<8x32xf32>
    %88 = arith.mulf %83, %87 : vector<8x32xf32>
    %89 = vector.broadcast %69 : vector<1x32xf32> to vector<8x32xf32>
    %90 = arith.mulf %88, %89 : vector<8x32xf32>
    %91 = vector.broadcast %70 : vector<1x32xf32> to vector<8x32xf32>
    %92 = arith.addf %90, %91 : vector<8x32xf32>
    %c0_35 = arith.constant 0 : index
    %c0_36 = arith.constant 0 : index
    %93 = vector.load %arg10[%c0_35, %c0_36] : memref<32x128xf32, #tpu.memory_space<vmem>>, vector<32x128xf32>
    %cst_37 = arith.constant dense<0.000000e+00> : vector<8x128xf32>
    %94 = tpu.matmul %92, %93, %cst_37 {dimension_numbers = #tpu.dot_dimension_numbers<[1], [0], [0], [1], [0, 0, 1, 1], [], []>} : vector<8x32xf32>, vector<32x128xf32>, vector<8x128xf32> -> vector<8x128xf32>
    %c0_38 = arith.constant 0 : index
    %c0_39 = arith.constant 0 : index
    %95 = vector.load %arg11[%c0_38, %c0_39] : memref<1x128xf32, #tpu.memory_space<vmem>>, vector<1x128xf32>
    %96 = vector.broadcast %95 : vector<1x128xf32> to vector<8x128xf32>
    %97 = arith.addf %94, %96 : vector<8x128xf32>
    %cst_40 = arith.constant 5.000000e-01 : f32
    %98 = vector.broadcast %cst_40 : f32 to vector<8x128xf32>
    %99 = arith.mulf %98, %97 : vector<8x128xf32>
    %cst_41 = arith.constant 4.471500e-02 : f32
    %100 = vector.broadcast %cst_41 : f32 to vector<8x128xf32>
    %101 = arith.mulf %100, %97 : vector<8x128xf32>
    %102 = arith.mulf %101, %97 : vector<8x128xf32>
    %103 = arith.mulf %102, %97 : vector<8x128xf32>
    %104 = arith.addf %97, %103 : vector<8x128xf32>
    %cst_42 = arith.constant 0.797884583 : f32
    %105 = vector.broadcast %cst_42 : f32 to vector<8x128xf32>
    %106 = arith.mulf %105, %104 : vector<8x128xf32>
    %107 = math.tanh %106 : vector<8x128xf32>
    %cst_43 = arith.constant 1.000000e+00 : f32
    %108 = vector.broadcast %cst_43 : f32 to vector<8x128xf32>
    %109 = arith.addf %108, %107 : vector<8x128xf32>
    %110 = arith.mulf %99, %109 : vector<8x128xf32>
    %c0_44 = arith.constant 0 : index
    %c0_45 = arith.constant 0 : index
    %111 = vector.load %arg12[%c0_44, %c0_45] : memref<128x32xf32, #tpu.memory_space<vmem>>, vector<128x32xf32>
    %cst_46 = arith.constant dense<0.000000e+00> : vector<8x32xf32>
    %112 = tpu.matmul %110, %111, %cst_46 {dimension_numbers = #tpu.dot_dimension_numbers<[1], [0], [0], [1], [0, 0, 1, 1], [], []>} : vector<8x128xf32>, vector<128x32xf32>, vector<8x32xf32> -> vector<8x32xf32>
    %c0_47 = arith.constant 0 : index
    %c0_48 = arith.constant 0 : index
    %113 = vector.load %arg13[%c0_47, %c0_48] : memref<1x32xf32, #tpu.memory_space<vmem>>, vector<1x32xf32>
    %114 = vector.broadcast %113 : vector<1x32xf32> to vector<8x32xf32>
    %115 = arith.addf %112, %114 : vector<8x32xf32>
    %116 = arith.addf %68, %115 : vector<8x32xf32>
    %c0_49 = arith.constant 0 : index
    %c0_50 = arith.constant 0 : index
    %c0_51 = arith.constant 0 : index
    %117 = vector.load %arg14[%c0_49, %c0_50, %c0_51] : memref<1x8x32xf32, #tpu.memory_space<vmem>>, vector<1x8x32xf32>
    %118 = vector.shape_cast %117 : vector<1x8x32xf32> to vector<8x32xf32>
    %119 = vector.shape_cast %116 : vector<8x32xf32> to vector<1x8x32xf32>
    tpu.vector_store %arg14[%c0_49, %c0_50, %c0_51], %119 {strides = array<i32>} : memref<1x8x32xf32, #tpu.memory_space<vmem>>, vector<1x8x32xf32>,
    return
  }
  func.func @transform_0(%arg0: i32) -> (i32, i32, i32) {
    %c0_i32 = arith.constant 0 : i32
    %c0_i32_0 = arith.constant 0 : i32
    %c0_i32_1 = arith.constant 0 : i32
    return %arg0, %c0_i32, %c0_i32_0 : i32, i32, i32
  }
  func.func @transform_1(%arg0: i32) -> (i32, i32) {
    %c0_i32 = arith.constant 0 : i32
    %c0_i32_0 = arith.constant 0 : i32
    %c0_i32_1 = arith.constant 0 : i32
    return %c0_i32, %c0_i32_0 : i32, i32
  }
  func.func @transform_2(%arg0: i32) -> (i32, i32) {
    %c0_i32 = arith.constant 0 : i32
    %c0_i32_0 = arith.constant 0 : i32
    %c0_i32_1 = arith.constant 0 : i32
    return %c0_i32, %c0_i32_0 : i32, i32
  }
  func.func @transform_3(%arg0: i32) -> (i32, i32) {
    %c0_i32 = arith.constant 0 : i32
    %c0_i32_0 = arith.constant 0 : i32
    %c0_i32_1 = arith.constant 0 : i32
    return %c0_i32, %c0_i32_0 : i32, i32
  }
  func.func @transform_4(%arg0: i32) -> (i32, i32) {
    %c0_i32 = arith.constant 0 : i32
    %c0_i32_0 = arith.constant 0 : i32
    %c0_i32_1 = arith.constant 0 : i32
    return %c0_i32, %c0_i32_0 : i32, i32
  }
  func.func @transform_5(%arg0: i32) -> (i32, i32) {
    %c0_i32 = arith.constant 0 : i32
    %c0_i32_0 = arith.constant 0 : i32
    %c0_i32_1 = arith.constant 0 : i32
    return %c0_i32, %c0_i32_0 : i32, i32
  }
  func.func @transform_6(%arg0: i32) -> (i32, i32) {
    %c0_i32 = arith.constant 0 : i32
    %c0_i32_0 = arith.constant 0 : i32
    %c0_i32_1 = arith.constant 0 : i32
    return %c0_i32, %c0_i32_0 : i32, i32
  }
  func.func @transform_7(%arg0: i32) -> (i32, i32) {
    %c0_i32 = arith.constant 0 : i32
    %c0_i32_0 = arith.constant 0 : i32
    %c0_i32_1 = arith.constant 0 : i32
    return %c0_i32, %c0_i32_0 : i32, i32
  }
  func.func @transform_8(%arg0: i32) -> (i32, i32) {
    %c0_i32 = arith.constant 0 : i32
    %c0_i32_0 = arith.constant 0 : i32
    %c0_i32_1 = arith.constant 0 : i32
    return %c0_i32, %c0_i32_0 : i32, i32
  }
  func.func @transform_9(%arg0: i32) -> (i32, i32) {
    %c0_i32 = arith.constant 0 : i32
    %c0_i32_0 = arith.constant 0 : i32
    %c0_i32_1 = arith.constant 0 : i32
    return %c0_i32, %c0_i32_0 : i32, i32
  }
  func.func @transform_10(%arg0: i32) -> (i32, i32) {
    %c0_i32 = arith.constant 0 : i32
    %c0_i32_0 = arith.constant 0 : i32
    %c0_i32_1 = arith.constant 0 : i32
    return %c0_i32, %c0_i32_0 : i32, i32
  }
  func.func @transform_11(%arg0: i32) -> (i32, i32) {
    %c0_i32 = arith.constant 0 : i32
    %c0_i32_0 = arith.constant 0 : i32
    %c0_i32_1 = arith.constant 0 : i32
    return %c0_i32, %c0_i32_0 : i32, i32
  }
  func.func @transform_12(%arg0: i32) -> (i32, i32) {
    %c0_i32 = arith.constant 0 : i32
    %c0_i32_0 = arith.constant 0 : i32
    %c0_i32_1 = arith.constant 0 : i32
    return %c0_i32, %c0_i32_0 : i32, i32
  }
  func.func @transform_13(%arg0: i32) -> (i32, i32, i32) {
    %c0_i32 = arith.constant 0 : i32
    %c0_i32_0 = arith.constant 0 : i32
    %c0_i32_1 = arith.constant 0 : i32
    return %arg0, %c0_i32, %c0_i32_0 : i32, i32, i32
  }
}

</mosaic_0001>

<llo_original>
// kernel: tpu_custom_call.1
$region0: #{tpu_custom_call.1}
  #allocation0 [shape = 'u32[]', space=smem, size = 0x4, offset = 0x4, fixed_abs, tag = 'smem constant byte address 0x4 - core index']
  #allocation1 [shape = 'u32[144,128]{1,0:T(1,128)}', space=vmem, size = 0x12000, scoped, tag = 'internal scratch']
  %s0 = inlined_call_operand.vmem [shape: f32[2,8,32], index: 0, kind: input, shape index: {}]
  %s1 = inlined_call_operand.vmem [shape: f32[1,32], index: 1, kind: input, shape index: {}]
  %s2 = inlined_call_operand.vmem [shape: f32[1,32], index: 2, kind: input, shape index: {}]
  %s3 = inlined_call_operand.vmem [shape: f32[32,96], index: 3, kind: input, shape index: {}]
  %s4 = inlined_call_operand.vmem [shape: f32[1,96], index: 4, kind: input, shape index: {}]
  %s5 = inlined_call_operand.vmem [shape: f32[32,32], index: 5, kind: input, shape index: {}]
  %s6 = inlined_call_operand.vmem [shape: f32[1,32], index: 6, kind: input, shape index: {}]
  %s7 = inlined_call_operand.vmem [shape: f32[1,32], index: 7, kind: input, shape index: {}]
  %s8 = inlined_call_operand.vmem [shape: f32[1,32], index: 8, kind: input, shape index: {}]
  %s9 = inlined_call_operand.vmem [shape: f32[32,128], index: 9, kind: input, shape index: {}]
  %s10 = inlined_call_operand.vmem [shape: f32[1,128], index: 10, kind: input, shape index: {}]
  %s11 = inlined_call_operand.vmem [shape: f32[128,32], index: 11, kind: input, shape index: {}]
  %s12 = inlined_call_operand.vmem [shape: f32[1,32], index: 12, kind: input, shape index: {}]
  %s13 = inlined_call_operand.hbm [shape: f32[2,8,32], index: 13, kind: output, shape index: {}]
  %s14 = sld [smem:[#allocation0]]
  $region85: #{tpu_custom_call.1} parent=0
    _
  %s16 = ssub.s32 1, %s14
  %s17 = scalar_select 0, %s16, %s14
  $region1: #{tpu_custom_call.1} parent=0
    #allocation2 [shape = 'u8[8192]{0}', space=vmem, size = 0x2000, scoped, tag = 'output window, operand 0']
    #allocation3 [shape = 's32[2]{0}', space=sflag, size = 0x8, scoped, tag = 'scoped memory for tpu_custom_call.1']
    %18 = vsyncpa [#allocation3], 0
    %s19 = scalar_lea.sflag [#allocation3], 1
    %20 = vsyncpa %s19, 0
    loop: start=0, step=1, limit=4
    $region2: #{tpu_custom_call.1} parent=1 // loop_pre_header
      _
    $region3: #{tpu_custom_call.1} parent=1 // loop_header
      %s22 = sphi 0, %s26
      %p23 = scmp.ge.s32.totalorder %s22, 4
      %s32 = sphi 0, %s34
      %s35 = sphi 0, %s32
      %s36 = sphi 0, %s35
      %s52 = sphi 0, %s36
      %s56 = sphi 0, %s56
      %s58 = sphi 0, %s56
      %s59 = sphi 0, %s58
      %s73 = sphi 0, %s59
      %s77 = sphi 0, %s77
      %s79 = sphi 0, %s77
      %s80 = sphi 0, %s79
      %s94 = sphi 0, %s80
      %s98 = sphi 0, %s98
      %s100 = sphi 0, %s98
      %s101 = sphi 0, %s100
      %s115 = sphi 0, %s101
      %s119 = sphi 0, %s119
      %s121 = sphi 0, %s119
      %s122 = sphi 0, %s121
      %s136 = sphi 0, %s122
      %s140 = sphi 0, %s140
      %s142 = sphi 0, %s140
      %s143 = sphi 0, %s142
      %s157 = sphi 0, %s143
      %s161 = sphi 0, %s161
      %s163 = sphi 0, %s161
      %s164 = sphi 0, %s163
      %s178 = sphi 0, %s164
      %s182 = sphi 0, %s182
      %s184 = sphi 0, %s182
      %s185 = sphi 0, %s184
      %s199 = sphi 0, %s185
      %s203 = sphi 0, %s203
      %s205 = sphi 0, %s203
      %s206 = sphi 0, %s205
      %s220 = sphi 0, %s206
      %s224 = sphi 0, %s224
      %s226 = sphi 0, %s224
      %s227 = sphi 0, %s226
      %s241 = sphi 0, %s227
      %s245 = sphi 0, %s245
      %s247 = sphi 0, %s245
      %s248 = sphi 0, %s247
      %s262 = sphi 0, %s248
      %s266 = sphi 0, %s266
      %s268 = sphi 0, %s266
      %s269 = sphi 0, %s268
      %s283 = sphi 0, %s269
      %s287 = sphi 0, %s287
      %s289 = sphi 0, %s287
      %s290 = sphi 0, %s289
      %s304 = sphi 0, %s290
      %s310 = sphi 0, %s312
      %s313 = sphi 0, %s310
      %s314 = sphi 0, %s313
      %s330 = sphi 0, %s314
    $region4: #{tpu_custom_call.1} parent=1 // loop_header_branch
      %25 = sbr.rel (%p23) target = $region8
    $region5: #{tpu_custom_call.1} parent=1 // loop_body
      %s27 = ssub.s32 %s22, 1
      %s28 = ssub.s32 %s22, 2
      %s29 = sadd.s32 %s22, 1
      %s30 = ssub.s32 %s22, %s29
      %p31 = scmp.eq.s32.totalorder %s30, 0
      %s33 = sadd.s32 %s32, 1
      %s34 = scalar_select %p31, %s32, %s33
      %p37 = pneg %p31
      %p38 = scmp.eq.s32.totalorder %s22, 1
      %p39 = por %p37, %p38
      %p40 = scmp.ne.s32.totalorder %s32, %s35
      %p41 = scmp.eq.s32.totalorder %s22, 0
      %p42 = por %p40, %p41
      %p43 = scmp.ne.s32.totalorder %s32, %s35
      %p44 = scmp.eq.s32.totalorder %s27, 1
      %p45 = por %p43, %p44
      %p46 = scmp.ne.s32.totalorder %s35, %s36
      %p47 = scmp.eq.s32.totalorder %s27, 0
      %p48 = por %p46, %p47
      %p49 = scmp.ne.s32.totalorder %s35, %s36
      %p50 = scmp.eq.s32.totalorder %s28, 1
      %p51 = por %p49, %p50
      %p53 = scmp.ne.s32.totalorder %s36, %s52
      %p54 = scmp.eq.s32.totalorder %s28, 0
      %p55 = por %p53, %p54
      %s57 = sadd.s32 %s56, 1
      %p60 = scmp.eq.s32.totalorder %s22, 1
      %p61 = scmp.ne.s32.totalorder %s56, %s58
      %p62 = scmp.eq.s32.totalorder %s22, 0
      %p63 = por %p61, %p62
      %p64 = scmp.ne.s32.totalorder %s56, %s58
      %p65 = scmp.eq.s32.totalorder %s27, 1
      %p66 = por %p64, %p65
      %p67 = scmp.ne.s32.totalorder %s58, %s59
      %p68 = scmp.eq.s32.totalorder %s27, 0
      %p69 = por %p67, %p68
      %p70 = scmp.ne.s32.totalorder %s58, %s59
      %p71 = scmp.eq.s32.totalorder %s28, 1
      %p72 = por %p70, %p71
      %p74 = scmp.ne.s32.totalorder %s59, %s73
      %p75 = scmp.eq.s32.totalorder %s28, 0
      %p76 = por %p74, %p75
      %s78 = sadd.s32 %s77, 1
      %p81 = scmp.eq.s32.totalorder %s22, 1
      %p82 = scmp.ne.s32.totalorder %s77, %s79
      %p83 = scmp.eq.s32.totalorder %s22, 0
      %p84 = por %p82, %p83
      %p85 = scmp.ne.s32.totalorder %s77, %s79
      %p86 = scmp.eq.s32.totalorder %s27, 1
      %p87 = por %p85, %p86
      %p88 = scmp.ne.s32.totalorder %s79, %s80
      %p89 = scmp.eq.s32.totalorder %s27, 0
      %p90 = por %p88, %p89
      %p91 = scmp.ne.s32.totalorder %s79, %s80
      %p92 = scmp.eq.s32.totalorder %s28, 1
      %p93 = por %p91, %p92
      %p95 = scmp.ne.s32.totalorder %s80, %s94
      %p96 = scmp.eq.s32.totalorder %s28, 0
      %p97 = por %p95, %p96
      %s99 = sadd.s32 %s98, 1
      %p102 = scmp.eq.s32.totalorder %s22, 1
      %p103 = scmp.ne.s32.totalorder %s98, %s100
      %p104 = scmp.eq.s32.totalorder %s22, 0
      %p105 = por %p103, %p104
      %p106 = scmp.ne.s32.totalorder %s98, %s100
      %p107 = scmp.eq.s32.totalorder %s27, 1
      %p108 = por %p106, %p107
      %p109 = scmp.ne.s32.totalorder %s100, %s101
      %p110 = scmp.eq.s32.totalorder %s27, 0
      %p111 = por %p109, %p110
      %p112 = scmp.ne.s32.totalorder %s100, %s101
      %p113 = scmp.eq.s32.totalorder %s28, 1
      %p114 = por %p112, %p113
      %p116 = scmp.ne.s32.totalorder %s101, %s115
      %p117 = scmp.eq.s32.totalorder %s28, 0
      %p118 = por %p116, %p117
      %s120 = sadd.s32 %s119, 1
      %p123 = scmp.eq.s32.totalorder %s22, 1
      %p124 = scmp.ne.s32.totalorder %s119, %s121
      %p125 = scmp.eq.s32.totalorder %s22, 0
      %p126 = por %p124, %p125
      %p127 = scmp.ne.s32.totalorder %s119, %s121
      %p128 = scmp.eq.s32.totalorder %s27, 1
      %p129 = por %p127, %p128
      %p130 = scmp.ne.s32.totalorder %s121, %s122
      %p131 = scmp.eq.s32.totalorder %s27, 0
      %p132 = por %p130, %p131
      %p133 = scmp.ne.s32.totalorder %s121, %s122
      %p134 = scmp.eq.s32.totalorder %s28, 1
      %p135 = por %p133, %p134
      %p137 = scmp.ne.s32.totalorder %s122, %s136
      %p138 = scmp.eq.s32.totalorder %s28, 0
      %p139 = por %p137, %p138
      %s141 = sadd.s32 %s140, 1
      %p144 = scmp.eq.s32.totalorder %s22, 1
      %p145 = scmp.ne.s32.totalorder %s140, %s142
      %p146 = scmp.eq.s32.totalorder %s22, 0
      %p147 = por %p145, %p146
      %p148 = scmp.ne.s32.totalorder %s140, %s142
      %p149 = scmp.eq.s32.totalorder %s27, 1
      %p150 = por %p148, %p149
      %p151 = scmp.ne.s32.totalorder %s142, %s143
      %p152 = scmp.eq.s32.totalorder %s27, 0
      %p153 = por %p151, %p152
      %p154 = scmp.ne.s32.totalorder %s142, %s143
      %p155 = scmp.eq.s32.totalorder %s28, 1
      %p156 = por %p154, %p155
      %p158 = scmp.ne.s32.totalorder %s143, %s157
      %p159 = scmp.eq.s32.totalorder %s28, 0
      %p160 = por %p158, %p159
      %s162 = sadd.s32 %s161, 1
      %p165 = scmp.eq.s32.totalorder %s22, 1
      %p166 = scmp.ne.s32.totalorder %s161, %s163
      %p167 = scmp.eq.s32.totalorder %s22, 0
      %p168 = por %p166, %p167
      %p169 = scmp.ne.s32.totalorder %s161, %s163
      %p170 = scmp.eq.s32.totalorder %s27, 1
      %p171 = por %p169, %p170
      %p172 = scmp.ne.s32.totalorder %s163, %s164
      %p173 = scmp.eq.s32.totalorder %s27, 0
      %p174 = por %p172, %p173
      %p175 = scmp.ne.s32.totalorder %s163, %s164
      %p176 = scmp.eq.s32.totalorder %s28, 1
      %p177 = por %p175, %p176
      %p179 = scmp.ne.s32.totalorder %s164, %s178
      %p180 = scmp.eq.s32.totalorder %s28, 0
      %p181 = por %p179, %p180
      %s183 = sadd.s32 %s182, 1
      %p186 = scmp.eq.s32.totalorder %s22, 1
      %p187 = scmp.ne.s32.totalorder %s182, %s184
      %p188 = scmp.eq.s32.totalorder %s22, 0
      %p189 = por %p187, %p188
      %p190 = scmp.ne.s32.totalorder %s182, %s184
      %p191 = scmp.eq.s32.totalorder %s27, 1
      %p192 = por %p190, %p191
      %p193 = scmp.ne.s32.totalorder %s184, %s185
      %p194 = scmp.eq.s32.totalorder %s27, 0
      %p195 = por %p193, %p194
      %p196 = scmp.ne.s32.totalorder %s184, %s185
      %p197 = scmp.eq.s32.totalorder %s28, 1
      %p198 = por %p196, %p197
      %p200 = scmp.ne.s32.totalorder %s185, %s199
      %p201 = scmp.eq.s32.totalorder %s28, 0
      %p202 = por %p200, %p201
      %s204 = sadd.s32 %s203, 1
      %p207 = scmp.eq.s32.totalorder %s22, 1
      %p208 = scmp.ne.s32.totalorder %s203, %s205
      %p209 = scmp.eq.s32.totalorder %s22, 0
      %p210 = por %p208, %p209
      %p211 = scmp.ne.s32.totalorder %s203, %s205
      %p212 = scmp.eq.s32.totalorder %s27, 1
      %p213 = por %p211, %p212
      %p214 = scmp.ne.s32.totalorder %s205, %s206
      %p215 = scmp.eq.s32.totalorder %s27, 0
      %p216 = por %p214, %p215
      %p217 = scmp.ne.s32.totalorder %s205, %s206
      %p218 = scmp.eq.s32.totalorder %s28, 1
      %p219 = por %p217, %p218
      %p221 = scmp.ne.s32.totalorder %s206, %s220
      %p222 = scmp.eq.s32.totalorder %s28, 0
      %p223 = por %p221, %p222
      %s225 = sadd.s32 %s224, 1
      %p228 = scmp.eq.s32.totalorder %s22, 1
      %p229 = scmp.ne.s32.totalorder %s224, %s226
      %p230 = scmp.eq.s32.totalorder %s22, 0
      %p231 = por %p229, %p230
      %p232 = scmp.ne.s32.totalorder %s224, %s226
      %p233 = scmp.eq.s32.totalorder %s27, 1
      %p234 = por %p232, %p233
      %p235 = scmp.ne.s32.totalorder %s226, %s227
      %p236 = scmp.eq.s32.totalorder %s27, 0
      %p237 = por %p235, %p236
      %p238 = scmp.ne.s32.totalorder %s226, %s227
      %p239 = scmp.eq.s32.totalorder %s28, 1
      %p240 = por %p238, %p239
      %p242 = scmp.ne.s32.totalorder %s227, %s241
      %p243 = scmp.eq.s32.totalorder %s28, 0
      %p244 = por %p242, %p243
      %s246 = sadd.s32 %s245, 1
      %p249 = scmp.eq.s32.totalorder %s22, 1
      %p250 = scmp.ne.s32.totalorder %s245, %s247
      %p251 = scmp.eq.s32.totalorder %s22, 0
      %p252 = por %p250, %p251
      %p253 = scmp.ne.s32.totalorder %s245, %s247
      %p254 = scmp.eq.s32.totalorder %s27, 1
      %p255 = por %p253, %p254
      %p256 = scmp.ne.s32.totalorder %s247, %s248
      %p257 = scmp.eq.s32.totalorder %s27, 0
      %p258 = por %p256, %p257
      %p259 = scmp.ne.s32.totalorder %s247, %s248
      %p260 = scmp.eq.s32.totalorder %s28, 1
      %p261 = por %p259, %p260
      %p263 = scmp.ne.s32.totalorder %s248, %s262
      %p264 = scmp.eq.s32.totalorder %s28, 0
      %p265 = por %p263, %p264
      %s267 = sadd.s32 %s266, 1
      %p270 = scmp.eq.s32.totalorder %s22, 1
      %p271 = scmp.ne.s32.totalorder %s266, %s268
      %p272 = scmp.eq.s32.totalorder %s22, 0
      %p273 = por %p271, %p272
      %p274 = scmp.ne.s32.totalorder %s266, %s268
      %p275 = scmp.eq.s32.totalorder %s27, 1
      %p276 = por %p274, %p275
      %p277 = scmp.ne.s32.totalorder %s268, %s269
      %p278 = scmp.eq.s32.totalorder %s27, 0
      %p279 = por %p277, %p278
      %p280 = scmp.ne.s32.totalorder %s268, %s269
      %p281 = scmp.eq.s32.totalorder %s28, 1
      %p282 = por %p280, %p281
      %p284 = scmp.ne.s32.totalorder %s269, %s283
      %p285 = scmp.eq.s32.totalorder %s28, 0
      %p286 = por %p284, %p285
      %s288 = sadd.s32 %s287, 1
      %p291 = scmp.eq.s32.totalorder %s22, 1
      %p292 = scmp.ne.s32.totalorder %s287, %s289
      %p293 = scmp.eq.s32.totalorder %s22, 0
      %p294 = por %p292, %p293
      %p295 = scmp.ne.s32.totalorder %s287, %s289
      %p296 = scmp.eq.s32.totalorder %s27, 1
      %p297 = por %p295, %p296
      %p298 = scmp.ne.s32.totalorder %s289, %s290
      %p299 = scmp.eq.s32.totalorder %s27, 0
      %p300 = por %p298, %p299
      %p301 = scmp.ne.s32.totalorder %s289, %s290
      %p302 = scmp.eq.s32.totalorder %s28, 1
      %p303 = por %p301, %p302
      %p305 = scmp.ne.s32.totalorder %s290, %s304
      %p306 = scmp.eq.s32.totalorder %s28, 0
      %p307 = por %p305, %p306
      %s308 = ssub.s32 %s22, %s29
      %p309 = scmp.eq.s32.totalorder %s308, 0
      %s311 = sadd.s32 %s310, 1
      %s312 = scalar_select %p309, %s310, %s311
      %p315 = pneg %p309
      %p316 = scmp.eq.s32.totalorder %s22, 1
      %p317 = por %p315, %p316
      %p318 = scmp.ne.s32.totalorder %s310, %s313
      %p319 = scmp.eq.s32.totalorder %s22, 0
      %p320 = por %p318, %p319
      %p321 = scmp.ne.s32.totalorder %s310, %s313
      %p322 = scmp.eq.s32.totalorder %s27, 1
      %p323 = por %p321, %p322
      %p324 = scmp.ne.s32.totalorder %s313, %s314
      %p325 = scmp.eq.s32.totalorder %s27, 0
      %p326 = por %p324, %p325
      %p327 = scmp.ne.s32.totalorder %s313, %s314
      %p328 = scmp.eq.s32.totalorder %s28, 1
      %p329 = por %p327, %p328
      %p331 = scmp.ne.s32.totalorder %s314, %s330
      %p332 = scmp.eq.s32.totalorder %s28, 0
      %p333 = por %p331, %p332
      %p334 = scmp.le.s32.totalorder 1, %s22
      %p335 = scmp.lt.s32.totalorder %s22, 3
      %p336 = pnand %p334, %p335
      %p337 = pneg %p336
      // Predicated region
      $region9: #{tpu_custom_call.1} parent=5 // pred_check
        _
      $region10: #{tpu_custom_call.1} parent=5 // pred_check_branch
        %339 = sbr.rel (%p336) target = $region12
      $region11: #{tpu_custom_call.1} parent=5 // pred_region
        %s340 = ssub.s32 %s22, 1
        // Predicated region
        $region13: #{tpu_custom_call.1} parent=11 // pred_check
          %p341 = pneg %p69
        $region14: #{tpu_custom_call.1} parent=11 // pred_check_branch
          %343 = sbr.rel (%p341) target = $region16
        $region15: #{tpu_custom_call.1} parent=11 // pred_region
          _
        $region16: #{tpu_custom_call.1} parent=11 // pred_fallthru
          _
        // Predicated region
        $region17: #{tpu_custom_call.1} parent=11 // pred_check
          %p344 = pneg %p90
        $region18: #{tpu_custom_call.1} parent=11 // pred_check_branch
          %346 = sbr.rel (%p344) target = $region20
        $region19: #{tpu_custom_call.1} parent=11 // pred_region
          _
        $region20: #{tpu_custom_call.1} parent=11 // pred_fallthru
          _
        // Predicated region
        $region21: #{tpu_custom_call.1} parent=11 // pred_check
          %p347 = pneg %p111
        $region22: #{tpu_custom_call.1} parent=11 // pred_check_branch
          %349 = sbr.rel (%p347) target = $region24
        $region23: #{tpu_custom_call.1} parent=11 // pred_region
          _
        $region24: #{tpu_custom_call.1} parent=11 // pred_fallthru
          _
        // Predicated region
        $region25: #{tpu_custom_call.1} parent=11 // pred_check
          %p350 = pneg %p132
        $region26: #{tpu_custom_call.1} parent=11 // pred_check_branch
          %352 = sbr.rel (%p350) target = $region28
        $region27: #{tpu_custom_call.1} parent=11 // pred_region
          _
        $region28: #{tpu_custom_call.1} parent=11 // pred_fallthru
          _
        // Predicated region
        $region29: #{tpu_custom_call.1} parent=11 // pred_check
          %p353 = pneg %p153
        $region30: #{tpu_custom_call.1} parent=11 // pred_check_branch
          %355 = sbr.rel (%p353) target = $region32
        $region31: #{tpu_custom_call.1} parent=11 // pred_region
          _
        $region32: #{tpu_custom_call.1} parent=11 // pred_fallthru
          _
        // Predicated region
        $region33: #{tpu_custom_call.1} parent=11 // pred_check
          %p356 = pneg %p174
        $region34: #{tpu_custom_call.1} parent=11 // pred_check_branch
          %358 = sbr.rel (%p356) target = $region36
        $region35: #{tpu_custom_call.1} parent=11 // pred_region
          _
        $region36: #{tpu_custom_call.1} parent=11 // pred_fallthru
          _
        // Predicated region
        $region37: #{tpu_custom_call.1} parent=11 // pred_check
          %p359 = pneg %p195
        $region38: #{tpu_custom_call.1} parent=11 // pred_check_branch
          %361 = sbr.rel (%p359) target = $region40
        $region39: #{tpu_custom_call.1} parent=11 // pred_region
          _
        $region40: #{tpu_custom_call.1} parent=11 // pred_fallthru
          _
        // Predicated region
        $region41: #{tpu_custom_call.1} parent=11 // pred_check
          %p362 = pneg %p216
        $region42: #{tpu_custom_call.1} parent=11 // pred_check_branch
          %364 = sbr.rel (%p362) target = $region44
        $region43: #{tpu_custom_call.1} parent=11 // pred_region
          _
        $region44: #{tpu_custom_call.1} parent=11 // pred_fallthru
          _
        // Predicated region
        $region45: #{tpu_custom_call.1} parent=11 // pred_check
          %p365 = pneg %p237
        $region46: #{tpu_custom_call.1} parent=11 // pred_check_branch
          %367 = sbr.rel (%p365) target = $region48
        $region47: #{tpu_custom_call.1} parent=11 // pred_region
          _
        $region48: #{tpu_custom_call.1} parent=11 // pred_fallthru
          _
        // Predicated region
        $region49: #{tpu_custom_call.1} parent=11 // pred_check
          %p368 = pneg %p258
        $region50: #{tpu_custom_call.1} parent=11 // pred_check_branch
          %370 = sbr.rel (%p368) target = $region52
        $region51: #{tpu_custom_call.1} parent=11 // pred_region
          _
        $region52: #{tpu_custom_call.1} parent=11 // pred_fallthru
          _
        // Predicated region
        $region53: #{tpu_custom_call.1} parent=11 // pred_check
          %p371 = pneg %p279
        $region54: #{tpu_custom_call.1} parent=11 // pred_check_branch
          %373 = sbr.rel (%p371) target = $region56
        $region55: #{tpu_custom_call.1} parent=11 // pred_region
          _
        $region56: #{tpu_custom_call.1} parent=11 // pred_fallthru
          _
        // Predicated region
        $region57: #{tpu_custom_call.1} parent=11 // pred_check
          %p374 = pneg %p300
        $region58: #{tpu_custom_call.1} parent=11 // pred_check_branch
          %376 = sbr.rel (%p374) target = $region60
        $region59: #{tpu_custom_call.1} parent=11 // pred_region
          _
        $region60: #{tpu_custom_call.1} parent=11 // pred_fallthru
          _
      $region12: #{tpu_custom_call.1} parent=5 // pred_fallthru
        _
      %p377 = scmp.lt.s32.totalorder %s22, 2
      // Predicated region
      $region61: #{tpu_custom_call.1} parent=5 // pred_check
        %p378 = pneg %p377
      $region62: #{tpu_custom_call.1} parent=5 // pred_check_branch
        %380 = sbr.rel (%p378) target = $region64
      $region63: #{tpu_custom_call.1} parent=5 // pred_region
        // Predicated region
        $region65: #{tpu_custom_call.1} parent=63 // pred_check
          %p381 = pneg %p42
        $region66: #{tpu_custom_call.1} parent=63 // pred_check_branch
          %383 = sbr.rel (%p381) target = $region68
        $region67: #{tpu_custom_call.1} parent=63 // pred_region
          %p384 = scmp.lt.s32.totalorder %s22, 1
          %s385 = scalar_select %p384, %s22, 1
          %s386 = smul.addr %s385, 8
          %s387 = scalar_lea.vmem %s0, %s386
        $region68: #{tpu_custom_call.1} parent=63 // pred_fallthru
          _
      $region64: #{tpu_custom_call.1} parent=5 // pred_fallthru
        _
      %p388 = scmp.le.s32.totalorder 1, %s22
      %p389 = scmp.lt.s32.totalorder %s22, 3
      %p390 = pnand %p388, %p389
      %p391 = pneg %p390
      // Predicated region
      $region69: #{tpu_custom_call.1} parent=5 // pred_check
        _
      $region70: #{tpu_custom_call.1} parent=5 // pred_check_branch
        %393 = sbr.rel (%p390) target = $region72
      $region71: #{tpu_custom_call.1} parent=5 // pred_region
        %s394 = ssub.s32 %s22, 1
        %p395 = scmp.lt.s32.totalorder %s27, 1
        %s396 = scalar_select %p395, %s27, 1
        %s397 = smul.addr %s396, 8
        %s398 = scalar_lea.vmem %s0, %s397
        %p399 = pneg %p48
        %p400 = pneg %p45
        %p401 = pneg %p69
        %p402 = pneg %p66
        %p403 = pneg %p90
        %p404 = pneg %p87
        %p405 = pneg %p111
        %p406 = pneg %p108
        %p407 = pneg %p132
        %p408 = pneg %p129
        %p409 = pneg %p153
        %p410 = pneg %p150
        %p411 = pneg %p174
        %p412 = pneg %p171
        %p413 = pneg %p195
        %p414 = pneg %p192
        %p415 = pneg %p216
        %p416 = pneg %p213
        %p417 = pneg %p237
        %p418 = pneg %p234
        %p419 = pneg %p258
        %p420 = pneg %p255
        %p421 = pneg %p279
        %p422 = pneg %p276
        %p423 = pneg %p300
        %p424 = pneg %p297
        %p425 = pneg %p326
        %p426 = pneg %p323
        %s427 = sand.u32 %s313, 1
        %s428 = scalar_lea.sflag [#allocation3], %s427
        %s429 = sand.u32 %s313, 1
        %s430 = smul.addr %s429, 8
        %s431 = scalar_lea.vmem [#allocation2], %s430
        %p432 = scmp.lt.s32.totalorder %s27, 1
        %s433 = scalar_select %p432, %s27, 1
        %s434 = smul.addr %s433, 8
        %s435 = scalar_lea.vmem %s0, %s434
        %v436 = vld [vmem:[%s435] sm:$0xff]
        %v437 = vld [vmem:[%s1] sm:$0x1]
        %v438 = vld [vmem:[%s2] sm:$0x1]
        %vm439 = vcmask 261120
        %v440 = vsel %vm439, %v436, 0.0
        %441 = vadd.xlane.f32.xlu0 %v440
        %v442 = vpop.xlane.xlu0 %441
        %v443 = vrcp.pop 32.0
        %v444 = vmul.f32 %v442, %v443
        %v445 = vsub.f32 %v436, %v444
        %v446 = vmul.f32 %v445, %v445
        %v447 = vsel %vm439, %v446, 0.0
        %448 = vadd.xlane.f32.xlu0 %v447
        %v449 = vpop.xlane.xlu0 %448
        %v450 = vmul.f32 %v449, %v443
        %v451 = vadd.f32 %v450, 1e-05
        %v452 = vrsqrt.pop %v451
        %v453 = vmul.f32 %v445, %v452
        %v455 = vlaneseq
        %v456 = vshrl.u32 %v455, 7
        %v457 = vsub.s32 0, %v456
        %v458 = vrot.slane %v437, %v457
        %v460 = vmul.f32 %v453, %v458
        %v462 = vlaneseq
        %v463 = vshrl.u32 %v462, 7
        %v464 = vsub.s32 0, %v463
        %v465 = vrot.slane %v438, %v464
        %v467 = vadd.f32 %v460, %v465
        %v468 = vld [vmem:[%s3] sm:$0xff]
        %v469 = vld [vmem:[%s3 + $0x8] sm:$0xff]
        %v470 = vld [vmem:[%s3 + $0x10] sm:$0xff]
        %v471 = vld [vmem:[%s3 + $0x18] sm:$0xff]
        %v472 = vld [vmem:[%s4] sm:$0x1]
        %v474 = vlaneseq
        %v475 = vshrl.u32 %v474, 7
        %v476 = vsub.s32 0, %v475
        %v477 = vrot.slane %v472, %v476
        %v480 = vsel %vm439, %v467, 0
        %482 = vmatprep.subr.mxu0 0.0
        %483 = vmatpush1.msra.mxu0 %v468
        %484 = vmatprep.subr.mxu0 0.0
        %485 = vmatpush1.msra.mxu0 %v469
        %486 = vmatprep.subr.mxu0 0.0
        %487 = vmatpush1.msra.mxu0 %v470
        %488 = vmatprep.subr.mxu0 0.0
        %489 = vmatpush1.msra.mxu0 %v471
        %490 = vmatprep.subr.mxu0 0.0
        %491 = vmatpush1.msra.mxu0 0.0
        %492 = vmatprep.subr.mxu0 0.0
        %493 = vmatpush1.msra.mxu0 0.0
        %494 = vmatprep.subr.mxu0 0.0
        %495 = vmatpush1.msra.mxu0 0.0
        %496 = vmatprep.subr.mxu0 0.0
        %497 = vmatpush1.msra.mxu0 0.0
        %498 = vmatprep.subr.mxu0 0.0
        %499 = vmatpush1.msra.mxu0 0.0
        %500 = vmatprep.subr.mxu0 0.0
        %501 = vmatpush1.msra.mxu0 0.0
        %502 = vmatprep.subr.mxu0 0.0
        %503 = vmatpush1.msra.mxu0 0.0
        %504 = vmatprep.subr.mxu0 0.0
        %505 = vmatpush1.msra.mxu0 0.0
        %506 = vmatprep.subr.mxu0 0.0
        %507 = vmatpush1.msra.mxu0 0.0
        %508 = vmatprep.subr.mxu0 0.0
        %509 = vmatpush1.msra.mxu0 0.0
        %510 = vmatprep.subr.mxu0 0.0
        %511 = vmatpush1.msra.mxu0 0.0
        %512 = vmatprep.subr.mxu0 0.0
        %513 = vmatpush1.msra.mxu0 0.0
        %514 = vmatprep.subr.mxu0 0.0
        %515 = vmatpush1.msra.mxu0 0.0
        %516 = vmatprep.subr.mxu0 0.0
        %517 = vmatpush1.msra.mxu0 0.0
        %518 = vmatprep.subr.mxu0 0.0
        %519 = vmatpush1.msra.mxu0 0.0
        %520 = vmatprep.subr.mxu0 0.0
        %521 = vmatpush1.msra.mxu0 0.0
        %522 = vmatprep.subr.mxu0 0.0
        %523 = vmatpush1.msra.mxu0 0.0
        %524 = vmatprep.subr.mxu0 0.0
        %525 = vmatpush1.msra.mxu0 0.0
        %526 = vmatprep.subr.mxu0 0.0
        %527 = vmatpush1.msra.mxu0 0.0
        %528 = vmatprep.subr.mxu0 0.0
        %529 = vmatpush1.msra.mxu0 0.0
        %530 = vmatprep.subr.mxu0 0.0
        %531 = vmatpush1.msra.mxu0 0.0
        %532 = vmatprep.subr.mxu0 0.0
        %533 = vmatpush1.msra.mxu0 0.0
        %534 = vmatprep.subr.mxu0 0.0
        %535 = vmatpush1.msra.mxu0 0.0
        %536 = vmatprep.subr.mxu0 0.0
        %537 = vmatpush1.msra.mxu0 0.0
        %538 = vmatprep.subr.mxu0 0.0
        %539 = vmatpush1.msra.mxu0 0.0
        %540 = vmatprep.subr.mxu0 0.0
        %541 = vmatpush1.msra.mxu0 0.0
        %542 = vmatprep.subr.mxu0 0.0
        %543 = vmatpush1.msra.mxu0 0.0
        %544 = vmatprep.subr.mxu0 0.0
        %545 = vmatpush1.msra.mxu0 0.0
        %546 = vmatprep.mubr.f32.mxu0 0.0
        %547 = vmatmul.mubr.f32.gmra.mrb[0].mxu0 %v480
        %v548 = vpop.f32.mrb[0].mxu0
        %v549 = vadd.f32 %v477, %v548
        %v550 = vpop.f32.mrb[0].mxu0
        %551 = vdwg.mxu0
        %v552 = vmul.f32 %v549, 0.35355338
        %554 = vrot.lane.b32.xlu0 %v552, 120
        %v555 = vpop.permute.xlu0 %554
        %557 = vrot.lane.b32.xlu0 %v552, 112
        %v558 = vpop.permute.xlu0 %557
        %560 = vrot.lane.b32.xlu0 %v552, 104
        %v561 = vpop.permute.xlu0 %560
        %v563 = vcombine.low %v552, %v558
        %v564 = vcombine.high %v552, %v558
        %v566 = vunpack.c.l.s4 1983009808
        %v567 = vunpack.c.0.s8 %v566
        %v568 = vlaneseq
        %v569 = vshrl.u32 %v568, 7
        %v570 = vsub.s32 %v567, %v569
        %v571 = vrot.slane %v563, %v570
        %v573 = vunpack.c.l.s4 1983009808
        %v574 = vunpack.c.0.s8 %v573
        %v575 = vlaneseq
        %v576 = vshrl.u32 %v575, 7
        %v577 = vsub.s32 %v574, %v576
        %v578 = vrot.slane %v564, %v577
        %v579 = vcombine.low %v555, %v561
        %v580 = vcombine.high %v555, %v561
        %v582 = vunpack.c.l.s4 1983009808
        %v583 = vunpack.c.0.s8 %v582
        %v584 = vlaneseq
        %v585 = vshrl.u32 %v584, 7
        %v586 = vsub.s32 %v583, %v585
        %v587 = vrot.slane %v579, %v586
        %v589 = vunpack.c.l.s4 1983009808
        %v590 = vunpack.c.0.s8 %v589
        %v591 = vlaneseq
        %v592 = vshrl.u32 %v591, 7
        %v593 = vsub.s32 %v590, %v592
        %v594 = vrot.slane %v580, %v593
        %v595 = vcombine.low %v571, %v587
        %v596 = vcombine.high %v571, %v587
        %v598 = vunpack.c.l.s4 1934713408
        %v599 = vunpack.c.0.s8 %v598
        %v600 = vlaneseq
        %v601 = vshrl.u32 %v600, 7
        %v602 = vsub.s32 %v599, %v601
        %v603 = vrot.slane %v595, %v602
        %v605 = vunpack.c.l.s4 1934713408
        %v606 = vunpack.c.0.s8 %v605
        %v607 = vlaneseq
        %v608 = vshrl.u32 %v607, 7
        %v609 = vsub.s32 %v606, %v608
        %v610 = vrot.slane %v596, %v609
        %v611 = vcombine.low %v578, %v594
        %v612 = vcombine.high %v578, %v594
        %v614 = vunpack.c.l.s4 1934713408
        %v615 = vunpack.c.0.s8 %v614
        %v616 = vlaneseq
        %v617 = vshrl.u32 %v616, 7
        %v618 = vsub.s32 %v615, %v617
        %v619 = vrot.slane %v611, %v618
        %v621 = vunpack.c.l.s4 1934713408
        %v622 = vunpack.c.0.s8 %v621
        %v623 = vlaneseq
        %v624 = vshrl.u32 %v623, 7
        %v625 = vsub.s32 %v622, %v624
        %v626 = vrot.slane %v612, %v625
        %v627 = vcombine.high %v603, 0.0
        %v628 = vcombine.high %v610, 0.0
        %v629 = vcombine.high %v619, 0.0
        %v630 = vcombine.high %v626, 0.0
        %632 = vrot.lane.b32.xlu0 %v549, 120
        %v633 = vpop.permute.xlu0 %632
        %634 = vrot.lane.b32.xlu0 %v549, 112
        %v635 = vpop.permute.xlu0 %634
        %636 = vrot.lane.b32.xlu0 %v549, 104
        %v637 = vpop.permute.xlu0 %636
        %638 = vrot.lane.b32.xlu0 %v549, 96
        %v639 = vpop.permute.xlu0 %638
        %640 = vrot.lane.b32.xlu0 %v633, 96
        %v641 = vpop.permute.xlu0 %640
        %642 = vrot.lane.b32.xlu0 %v635, 96
        %v643 = vpop.permute.xlu0 %642
        %644 = vrot.lane.b32.xlu0 %v637, 96
        %v645 = vpop.permute.xlu0 %644
        %v650 = vcombine.low %v639, %v643
        %v651 = vcombine.high %v639, %v643
        %v653 = vunpack.c.l.s4 1983009808
        %v654 = vunpack.c.0.s8 %v653
        %v655 = vlaneseq
        %v656 = vshrl.u32 %v655, 7
        %v657 = vsub.s32 %v654, %v656
        %v658 = vrot.slane %v650, %v657
        %v660 = vunpack.c.l.s4 1983009808
        %v661 = vunpack.c.0.s8 %v660
        %v662 = vlaneseq
        %v663 = vshrl.u32 %v662, 7
        %v664 = vsub.s32 %v661, %v663
        %v665 = vrot.slane %v651, %v664
        %v666 = vcombine.low %v641, %v645
        %v667 = vcombine.high %v641, %v645
        %v669 = vunpack.c.l.s4 1983009808
        %v670 = vunpack.c.0.s8 %v669
        %v671 = vlaneseq
        %v672 = vshrl.u32 %v671, 7
        %v673 = vsub.s32 %v670, %v672
        %v674 = vrot.slane %v666, %v673
        %v676 = vunpack.c.l.s4 1983009808
        %v677 = vunpack.c.0.s8 %v676
        %v678 = vlaneseq
        %v679 = vshrl.u32 %v678, 7
        %v680 = vsub.s32 %v677, %v679
        %v681 = vrot.slane %v667, %v680
        %v682 = vcombine.low %v658, %v674
        %v683 = vcombine.high %v658, %v674
        %v685 = vunpack.c.l.s4 1934713408
        %v686 = vunpack.c.0.s8 %v685
        %v687 = vlaneseq
        %v688 = vshrl.u32 %v687, 7
        %v689 = vsub.s32 %v686, %v688
        %v690 = vrot.slane %v682, %v689
        %v692 = vunpack.c.l.s4 1934713408
        %v693 = vunpack.c.0.s8 %v692
        %v694 = vlaneseq
        %v695 = vshrl.u32 %v694, 7
        %v696 = vsub.s32 %v693, %v695
        %v697 = vrot.slane %v683, %v696
        %v698 = vcombine.low %v665, %v681
        %v699 = vcombine.high %v665, %v681
        %v701 = vunpack.c.l.s4 1934713408
        %v702 = vunpack.c.0.s8 %v701
        %v703 = vlaneseq
        %v704 = vshrl.u32 %v703, 7
        %v705 = vsub.s32 %v702, %v704
        %v706 = vrot.slane %v698, %v705
        %v708 = vunpack.c.l.s4 1934713408
        %v709 = vunpack.c.0.s8 %v708
        %v710 = vlaneseq
        %v711 = vshrl.u32 %v710, 7
        %v712 = vsub.s32 %v709, %v711
        %v713 = vrot.slane %v699, %v712
        %v714 = vcombine.high %v690, 0.0
        %v715 = vcombine.high %v697, 0.0
        %v716 = vcombine.high %v706, 0.0
        %v717 = vcombine.high %v713, 0.0
        %718 = vrot.lane.b32.xlu0 %v549, 64
        %v719 = vpop.permute.xlu0 %718
        %720 = vrot.lane.b32.xlu0 %v633, 64
        %v721 = vpop.permute.xlu0 %720
        %722 = vrot.lane.b32.xlu0 %v635, 64
        %v723 = vpop.permute.xlu0 %722
        %724 = vrot.lane.b32.xlu0 %v637, 64
        %v725 = vpop.permute.xlu0 %724
        %v730 = vcombine.low %v719, %v723
        %v731 = vcombine.high %v719, %v723
        %v733 = vunpack.c.l.s4 1983009808
        %v734 = vunpack.c.0.s8 %v733
        %v735 = vlaneseq
        %v736 = vshrl.u32 %v735, 7
        %v737 = vsub.s32 %v734, %v736
        %v738 = vrot.slane %v730, %v737
        %v740 = vunpack.c.l.s4 1983009808
        %v741 = vunpack.c.0.s8 %v740
        %v742 = vlaneseq
        %v743 = vshrl.u32 %v742, 7
        %v744 = vsub.s32 %v741, %v743
        %v745 = vrot.slane %v731, %v744
        %v746 = vcombine.low %v721, %v725
        %v747 = vcombine.high %v721, %v725
        %v749 = vunpack.c.l.s4 1983009808
        %v750 = vunpack.c.0.s8 %v749
        %v751 = vlaneseq
        %v752 = vshrl.u32 %v751, 7
        %v753 = vsub.s32 %v750, %v752
        %v754 = vrot.slane %v746, %v753
        %v756 = vunpack.c.l.s4 1983009808
        %v757 = vunpack.c.0.s8 %v756
        %v758 = vlaneseq
        %v759 = vshrl.u32 %v758, 7
        %v760 = vsub.s32 %v757, %v759
        %v761 = vrot.slane %v747, %v760
        %v762 = vcombine.low %v738, %v754
        %v763 = vcombine.high %v738, %v754
        %v765 = vunpack.c.l.s4 1934713408
        %v766 = vunpack.c.0.s8 %v765
        %v767 = vlaneseq
        %v768 = vshrl.u32 %v767, 7
        %v769 = vsub.s32 %v766, %v768
        %v770 = vrot.slane %v762, %v769
        %v772 = vunpack.c.l.s4 1934713408
        %v773 = vunpack.c.0.s8 %v772
        %v774 = vlaneseq
        %v775 = vshrl.u32 %v774, 7
        %v776 = vsub.s32 %v773, %v775
        %v777 = vrot.slane %v763, %v776
        %v778 = vcombine.low %v745, %v761
        %v779 = vcombine.high %v745, %v761
        %v781 = vunpack.c.l.s4 1934713408
        %v782 = vunpack.c.0.s8 %v781
        %v783 = vlaneseq
        %v784 = vshrl.u32 %v783, 7
        %v785 = vsub.s32 %v782, %v784
        %v786 = vrot.slane %v778, %v785
        %v788 = vunpack.c.l.s4 1934713408
        %v789 = vunpack.c.0.s8 %v788
        %v790 = vlaneseq
        %v791 = vshrl.u32 %v790, 7
        %v792 = vsub.s32 %v789, %v791
        %v793 = vrot.slane %v779, %v792
        %v794 = vcombine.high %v770, 0.0
        %v795 = vcombine.high %v777, 0.0
        %v796 = vcombine.high %v786, 0.0
        %v797 = vcombine.high %v793, 0.0
        %v798 = vcombine.low %v603, %v610
        %v800 = vunpack.c.l.s4 1983009808
        %v801 = vunpack.c.0.s8 %v800
        %v802 = vlaneseq
        %v803 = vshrl.u32 %v802, 7
        %v804 = vsub.s32 %v801, %v803
        %v805 = vrot.slane %v798, %v804
        %v806 = vcombine.low %v627, %v628
        %v808 = vunpack.c.l.s4 1983009808
        %v809 = vunpack.c.0.s8 %v808
        %v810 = vlaneseq
        %v811 = vshrl.u32 %v810, 7
        %v812 = vsub.s32 %v809, %v811
        %v813 = vrot.slane %v806, %v812
        %v814 = vcombine.low %v619, %v626
        %v816 = vunpack.c.l.s4 1983009808
        %v817 = vunpack.c.0.s8 %v816
        %v818 = vlaneseq
        %v819 = vshrl.u32 %v818, 7
        %v820 = vsub.s32 %v817, %v819
        %v821 = vrot.slane %v814, %v820
        %v822 = vcombine.low %v629, %v630
        %v824 = vunpack.c.l.s4 1983009808
        %v825 = vunpack.c.0.s8 %v824
        %v826 = vlaneseq
        %v827 = vshrl.u32 %v826, 7
        %v828 = vsub.s32 %v825, %v827
        %v829 = vrot.slane %v822, %v828
        %v830 = vcombine.low %v805, %v813
        %v831 = vcombine.high %v805, %v813
        %v833 = vunpack.c.l.s4 1934713408
        %v834 = vunpack.c.0.s8 %v833
        %v835 = vlaneseq
        %v836 = vshrl.u32 %v835, 7
        %v837 = vsub.s32 %v834, %v836
        %v838 = vrot.slane %v830, %v837
        %v840 = vunpack.c.l.s4 1934713408
        %v841 = vunpack.c.0.s8 %v840
        %v842 = vlaneseq
        %v843 = vshrl.u32 %v842, 7
        %v844 = vsub.s32 %v841, %v843
        %v845 = vrot.slane %v831, %v844
        %v846 = vcombine.low %v821, %v829
        %v847 = vcombine.high %v821, %v829
        %v849 = vunpack.c.l.s4 1934713408
        %v850 = vunpack.c.0.s8 %v849
        %v851 = vlaneseq
        %v852 = vshrl.u32 %v851, 7
        %v853 = vsub.s32 %v850, %v852
        %v854 = vrot.slane %v846, %v853
        %v856 = vunpack.c.l.s4 1934713408
        %v857 = vunpack.c.0.s8 %v856
        %v858 = vlaneseq
        %v859 = vshrl.u32 %v858, 7
        %v860 = vsub.s32 %v857, %v859
        %v861 = vrot.slane %v847, %v860
        %v862 = vcombine.low %v838, %v854
        %v863 = vcombine.high %v838, %v854
        %v864 = vcombine.low %v845, %v861
        %v865 = vcombine.high %v845, %v861
        %v866 = vcombine.low %v690, %v697
        %v868 = vunpack.c.l.s4 1983009808
        %v869 = vunpack.c.0.s8 %v868
        %v870 = vlaneseq
        %v871 = vshrl.u32 %v870, 7
        %v872 = vsub.s32 %v869, %v871
        %v873 = vrot.slane %v866, %v872
        %v874 = vcombine.low %v714, %v715
        %v876 = vunpack.c.l.s4 1983009808
        %v877 = vunpack.c.0.s8 %v876
        %v878 = vlaneseq
        %v879 = vshrl.u32 %v878, 7
        %v880 = vsub.s32 %v877, %v879
        %v881 = vrot.slane %v874, %v880
        %v882 = vcombine.low %v706, %v713
        %v884 = vunpack.c.l.s4 1983009808
        %v885 = vunpack.c.0.s8 %v884
        %v886 = vlaneseq
        %v887 = vshrl.u32 %v886, 7
        %v888 = vsub.s32 %v885, %v887
        %v889 = vrot.slane %v882, %v888
        %v890 = vcombine.low %v716, %v717
        %v892 = vunpack.c.l.s4 1983009808
        %v893 = vunpack.c.0.s8 %v892
        %v894 = vlaneseq
        %v895 = vshrl.u32 %v894, 7
        %v896 = vsub.s32 %v893, %v895
        %v897 = vrot.slane %v890, %v896
        %v898 = vcombine.low %v873, %v881
        %v899 = vcombine.high %v873, %v881
        %v901 = vunpack.c.l.s4 1934713408
        %v902 = vunpack.c.0.s8 %v901
        %v903 = vlaneseq
        %v904 = vshrl.u32 %v903, 7
        %v905 = vsub.s32 %v902, %v904
        %v906 = vrot.slane %v898, %v905
        %v908 = vunpack.c.l.s4 1934713408
        %v909 = vunpack.c.0.s8 %v908
        %v910 = vlaneseq
        %v911 = vshrl.u32 %v910, 7
        %v912 = vsub.s32 %v909, %v911
        %v913 = vrot.slane %v899, %v912
        %v914 = vcombine.low %v889, %v897
        %v915 = vcombine.high %v889, %v897
        %v917 = vunpack.c.l.s4 1934713408
        %v918 = vunpack.c.0.s8 %v917
        %v919 = vlaneseq
        %v920 = vshrl.u32 %v919, 7
        %v921 = vsub.s32 %v918, %v920
        %v922 = vrot.slane %v914, %v921
        %v924 = vunpack.c.l.s4 1934713408
        %v925 = vunpack.c.0.s8 %v924
        %v926 = vlaneseq
        %v927 = vshrl.u32 %v926, 7
        %v928 = vsub.s32 %v925, %v927
        %v929 = vrot.slane %v915, %v928
        %v930 = vcombine.low %v906, %v922
        %v931 = vcombine.high %v906, %v922
        %v932 = vcombine.low %v913, %v929
        %v933 = vcombine.high %v913, %v929
        %v934 = vcombine.low %v770, %v777
        %v936 = vunpack.c.l.s4 1983009808
        %v937 = vunpack.c.0.s8 %v936
        %v938 = vlaneseq
        %v939 = vshrl.u32 %v938, 7
        %v940 = vsub.s32 %v937, %v939
        %v941 = vrot.slane %v934, %v940
        %v942 = vcombine.low %v794, %v795
        %v944 = vunpack.c.l.s4 1983009808
        %v945 = vunpack.c.0.s8 %v944
        %v946 = vlaneseq
        %v947 = vshrl.u32 %v946, 7
        %v948 = vsub.s32 %v945, %v947
        %v949 = vrot.slane %v942, %v948
        %v950 = vcombine.low %v786, %v793
        %v952 = vunpack.c.l.s4 1983009808
        %v953 = vunpack.c.0.s8 %v952
        %v954 = vlaneseq
        %v955 = vshrl.u32 %v954, 7
        %v956 = vsub.s32 %v953, %v955
        %v957 = vrot.slane %v950, %v956
        %v958 = vcombine.low %v796, %v797
        %v960 = vunpack.c.l.s4 1983009808
        %v961 = vunpack.c.0.s8 %v960
        %v962 = vlaneseq
        %v963 = vshrl.u32 %v962, 7
        %v964 = vsub.s32 %v961, %v963
        %v965 = vrot.slane %v958, %v964
        %v966 = vcombine.low %v941, %v949
        %v967 = vcombine.high %v941, %v949
        %v969 = vunpack.c.l.s4 1934713408
        %v970 = vunpack.c.0.s8 %v969
        %v971 = vlaneseq
        %v972 = vshrl.u32 %v971, 7
        %v973 = vsub.s32 %v970, %v972
        %v974 = vrot.slane %v966, %v973
        %v976 = vunpack.c.l.s4 1934713408
        %v977 = vunpack.c.0.s8 %v976
        %v978 = vlaneseq
        %v979 = vshrl.u32 %v978, 7
        %v980 = vsub.s32 %v977, %v979
        %v981 = vrot.slane %v967, %v980
        %v982 = vcombine.low %v957, %v965
        %v983 = vcombine.high %v957, %v965
        %v985 = vunpack.c.l.s4 1934713408
        %v986 = vunpack.c.0.s8 %v985
        %v987 = vlaneseq
        %v988 = vshrl.u32 %v987, 7
        %v989 = vsub.s32 %v986, %v988
        %v990 = vrot.slane %v982, %v989
        %v992 = vunpack.c.l.s4 1934713408
        %v993 = vunpack.c.0.s8 %v992
        %v994 = vlaneseq
        %v995 = vshrl.u32 %v994, 7
        %v996 = vsub.s32 %v993, %v995
        %v997 = vrot.slane %v983, %v996
        %v998 = vcombine.low %v974, %v990
        %v999 = vcombine.high %v974, %v990
        %v1000 = vcombine.low %v981, %v997
        %v1001 = vcombine.high %v981, %v997
        %v1002 = vlaneseq
        %v1003 = vshrl.u32 %v1002, 7
        %v1004 = vlaneseq
        %v1005 = vand.u32 %v1004, 127
        %vm1006 = vcmp.ge.s32.totalorder %v1003, %v1005
        %vm1007 = vcmask 64512
        %v1009 = vsel %vm1007, %v862, 0
        %v1012 = vsel %vm1007, %v930, 0
        %1014 = vmatprep.subr.mxu0 0.0
        %1015 = vmatpush1.xpose.msra.mxu0 %v1012
        %1016 = vmatprep.subr.mxu0 0.0
        %1017 = vmatpush1.xpose.msra.mxu0 0.0
        %1018 = vmatprep.subr.mxu0 0.0
        %1019 = vmatpush1.xpose.msra.mxu0 0.0
        %1020 = vmatprep.subr.mxu0 0.0
        %1021 = vmatpush1.xpose.msra.mxu0 0.0
        %1022 = vmatprep.subr.mxu0 0.0
        %1023 = vmatpush1.xpose.msra.mxu0 0.0
        %1024 = vmatprep.subr.mxu0 0.0
        %1025 = vmatpush1.xpose.msra.mxu0 0.0
        %1026 = vmatprep.subr.mxu0 0.0
        %1027 = vmatpush1.xpose.msra.mxu0 0.0
        %1028 = vmatprep.subr.mxu0 0.0
        %1029 = vmatpush1.xpose.msra.mxu0 0.0
        %1030 = vmatprep.subr.mxu0 0.0
        %1031 = vmatpush1.xpose.msra.mxu0 0.0
        %1032 = vmatprep.subr.mxu0 0.0
        %1033 = vmatpush1.xpose.msra.mxu0 0.0
        %1034 = vmatprep.subr.mxu0 0.0
        %1035 = vmatpush1.xpose.msra.mxu0 0.0
        %1036 = vmatprep.subr.mxu0 0.0
        %1037 = vmatpush1.xpose.msra.mxu0 0.0
        %1038 = vmatprep.subr.mxu0 0.0
        %1039 = vmatpush1.xpose.msra.mxu0 0.0
        %1040 = vmatprep.subr.mxu0 0.0
        %1041 = vmatpush1.xpose.msra.mxu0 0.0
        %1042 = vmatprep.subr.mxu0 0.0
        %1043 = vmatpush1.xpose.msra.mxu0 0.0
        %1044 = vmatprep.subr.mxu0 0.0
        %1045 = vmatpush1.xpose.msra.mxu0 0.0
        %1046 = vmatprep.subr.mxu0 0.0
        %1047 = vmatpush1.xpose.msra.mxu0 0.0
        %1048 = vmatprep.subr.mxu0 0.0
        %1049 = vmatpush1.xpose.msra.mxu0 0.0
        %1050 = vmatprep.subr.mxu0 0.0
        %1051 = vmatpush1.xpose.msra.mxu0 0.0
        %1052 = vmatprep.subr.mxu0 0.0
        %1053 = vmatpush1.xpose.msra.mxu0 0.0
        %1054 = vmatprep.subr.mxu0 0.0
        %1055 = vmatpush1.xpose.msra.mxu0 0.0
        %1056 = vmatprep.subr.mxu0 0.0
        %1057 = vmatpush1.xpose.msra.mxu0 0.0
        %1058 = vmatprep.subr.mxu0 0.0
        %1059 = vmatpush1.xpose.msra.mxu0 0.0
        %1060 = vmatprep.subr.mxu0 0.0
        %1061 = vmatpush1.xpose.msra.mxu0 0.0
        %1062 = vmatprep.subr.mxu0 0.0
        %1063 = vmatpush1.xpose.msra.mxu0 0.0
        %1064 = vmatprep.subr.mxu0 0.0
        %1065 = vmatpush1.xpose.msra.mxu0 0.0
        %1066 = vmatprep.subr.mxu0 0.0
        %1067 = vmatpush1.xpose.msra.mxu0 0.0
        %1068 = vmatprep.subr.mxu0 0.0
        %1069 = vmatpush1.xpose.msra.mxu0 0.0
        %1070 = vmatprep.subr.mxu0 0.0
        %1071 = vmatpush1.xpose.msra.mxu0 0.0
        %1072 = vmatprep.subr.mxu0 0.0
        %1073 = vmatpush1.xpose.msra.mxu0 0.0
        %1074 = vmatprep.subr.mxu0 0.0
        %1075 = vmatpush1.xpose.msra.mxu0 0.0
        %1076 = vmatprep.subr.mxu0 0.0
        %1077 = vmatpush1.xpose.msra.mxu0 0.0
        %1078 = vmatprep.mubr.f32.mxu0 0.0
        %1079 = vmatmul.mubr.f32.gmra.mrb[0].mxu0 %v1009
        %v1080 = vpop.f32.mrb[0].mxu0
        %v1081 = vadd.f32 0.0, %v1080
        %v1082 = vpop.f32.mrb[0].mxu0
        %1083 = vdwg.mxu0
        %v1085 = vsel %vm1007, %v863, 0
        %v1088 = vsel %vm1007, %v931, 0
        %1090 = vmatprep.subr.mxu0 0.0
        %1091 = vmatpush1.xpose.msra.mxu0 %v1088
        %1092 = vmatprep.subr.mxu0 0.0
        %1093 = vmatpush1.xpose.msra.mxu0 0.0
        %1094 = vmatprep.subr.mxu0 0.0
        %1095 = vmatpush1.xpose.msra.mxu0 0.0
        %1096 = vmatprep.subr.mxu0 0.0
        %1097 = vmatpush1.xpose.msra.mxu0 0.0
        %1098 = vmatprep.subr.mxu0 0.0
        %1099 = vmatpush1.xpose.msra.mxu0 0.0
        %1100 = vmatprep.subr.mxu0 0.0
        %1101 = vmatpush1.xpose.msra.mxu0 0.0
        %1102 = vmatprep.subr.mxu0 0.0
        %1103 = vmatpush1.xpose.msra.mxu0 0.0
        %1104 = vmatprep.subr.mxu0 0.0
        %1105 = vmatpush1.xpose.msra.mxu0 0.0
        %1106 = vmatprep.subr.mxu0 0.0
        %1107 = vmatpush1.xpose.msra.mxu0 0.0
        %1108 = vmatprep.subr.mxu0 0.0
        %1109 = vmatpush1.xpose.msra.mxu0 0.0
        %1110 = vmatprep.subr.mxu0 0.0
        %1111 = vmatpush1.xpose.msra.mxu0 0.0
        %1112 = vmatprep.subr.mxu0 0.0
        %1113 = vmatpush1.xpose.msra.mxu0 0.0
        %1114 = vmatprep.subr.mxu0 0.0
        %1115 = vmatpush1.xpose.msra.mxu0 0.0
        %1116 = vmatprep.subr.mxu0 0.0
        %1117 = vmatpush1.xpose.msra.mxu0 0.0
        %1118 = vmatprep.subr.mxu0 0.0
        %1119 = vmatpush1.xpose.msra.mxu0 0.0
        %1120 = vmatprep.subr.mxu0 0.0
        %1121 = vmatpush1.xpose.msra.mxu0 0.0
        %1122 = vmatprep.subr.mxu0 0.0
        %1123 = vmatpush1.xpose.msra.mxu0 0.0
        %1124 = vmatprep.subr.mxu0 0.0
        %1125 = vmatpush1.xpose.msra.mxu0 0.0
        %1126 = vmatprep.subr.mxu0 0.0
        %1127 = vmatpush1.xpose.msra.mxu0 0.0
        %1128 = vmatprep.subr.mxu0 0.0
        %1129 = vmatpush1.xpose.msra.mxu0 0.0
        %1130 = vmatprep.subr.mxu0 0.0
        %1131 = vmatpush1.xpose.msra.mxu0 0.0
        %1132 = vmatprep.subr.mxu0 0.0
        %1133 = vmatpush1.xpose.msra.mxu0 0.0
        %1134 = vmatprep.subr.mxu0 0.0
        %1135 = vmatpush1.xpose.msra.mxu0 0.0
        %1136 = vmatprep.subr.mxu0 0.0
        %1137 = vmatpush1.xpose.msra.mxu0 0.0
        %1138 = vmatprep.subr.mxu0 0.0
        %1139 = vmatpush1.xpose.msra.mxu0 0.0
        %1140 = vmatprep.subr.mxu0 0.0
        %1141 = vmatpush1.xpose.msra.mxu0 0.0
        %1142 = vmatprep.subr.mxu0 0.0
        %1143 = vmatpush1.xpose.msra.mxu0 0.0
        %1144 = vmatprep.subr.mxu0 0.0
        %1145 = vmatpush1.xpose.msra.mxu0 0.0
        %1146 = vmatprep.subr.mxu0 0.0
        %1147 = vmatpush1.xpose.msra.mxu0 0.0
        %1148 = vmatprep.subr.mxu0 0.0
        %1149 = vmatpush1.xpose.msra.mxu0 0.0
        %1150 = vmatprep.subr.mxu0 0.0
        %1151 = vmatpush1.xpose.msra.mxu0 0.0
        %1152 = vmatprep.subr.mxu0 0.0
        %1153 = vmatpush1.xpose.msra.mxu0 0.0
        %1154 = vmatprep.mubr.f32.mxu0 0.0
        %1155 = vmatmul.mubr.f32.gmra.mrb[0].mxu0 %v1085
        %v1156 = vpop.f32.mrb[0].mxu0
        %v1157 = vadd.f32 0.0, %v1156
        %v1158 = vpop.f32.mrb[0].mxu0
        %1159 = vdwg.mxu0
        %v1161 = vsel %vm1007, %v864, 0
        %v1164 = vsel %vm1007, %v932, 0
        %1166 = vmatprep.subr.mxu0 0.0
        %1167 = vmatpush1.xpose.msra.mxu0 %v1164
        %1168 = vmatprep.subr.mxu0 0.0
        %1169 = vmatpush1.xpose.msra.mxu0 0.0
        %1170 = vmatprep.subr.mxu0 0.0
        %1171 = vmatpush1.xpose.msra.mxu0 0.0
        %1172 = vmatprep.subr.mxu0 0.0
        %1173 = vmatpush1.xpose.msra.mxu0 0.0
        %1174 = vmatprep.subr.mxu0 0.0
        %1175 = vmatpush1.xpose.msra.mxu0 0.0
        %1176 = vmatprep.subr.mxu0 0.0
        %1177 = vmatpush1.xpose.msra.mxu0 0.0
        %1178 = vmatprep.subr.mxu0 0.0
        %1179 = vmatpush1.xpose.msra.mxu0 0.0
        %1180 = vmatprep.subr.mxu0 0.0
        %1181 = vmatpush1.xpose.msra.mxu0 0.0
        %1182 = vmatprep.subr.mxu0 0.0
        %1183 = vmatpush1.xpose.msra.mxu0 0.0
        %1184 = vmatprep.subr.mxu0 0.0
        %1185 = vmatpush1.xpose.msra.mxu0 0.0
        %1186 = vmatprep.subr.mxu0 0.0
        %1187 = vmatpush1.xpose.msra.mxu0 0.0
        %1188 = vmatprep.subr.mxu0 0.0
        %1189 = vmatpush1.xpose.msra.mxu0 0.0
        %1190 = vmatprep.subr.mxu0 0.0
        %1191 = vmatpush1.xpose.msra.mxu0 0.0
        %1192 = vmatprep.subr.mxu0 0.0
        %1193 = vmatpush1.xpose.msra.mxu0 0.0
        %1194 = vmatprep.subr.mxu0 0.0
        %1195 = vmatpush1.xpose.msra.mxu0 0.0
        %1196 = vmatprep.subr.mxu0 0.0
        %1197 = vmatpush1.xpose.msra.mxu0 0.0
        %1198 = vmatprep.subr.mxu0 0.0
        %1199 = vmatpush1.xpose.msra.mxu0 0.0
        %1200 = vmatprep.subr.mxu0 0.0
        %1201 = vmatpush1.xpose.msra.mxu0 0.0
        %1202 = vmatprep.subr.mxu0 0.0
        %1203 = vmatpush1.xpose.msra.mxu0 0.0
        %1204 = vmatprep.subr.mxu0 0.0
        %1205 = vmatpush1.xpose.msra.mxu0 0.0
        %1206 = vmatprep.subr.mxu0 0.0
        %1207 = vmatpush1.xpose.msra.mxu0 0.0
        %1208 = vmatprep.subr.mxu0 0.0
        %1209 = vmatpush1.xpose.msra.mxu0 0.0
        %1210 = vmatprep.subr.mxu0 0.0
        %1211 = vmatpush1.xpose.msra.mxu0 0.0
        %1212 = vmatprep.subr.mxu0 0.0
        %1213 = vmatpush1.xpose.msra.mxu0 0.0
        %1214 = vmatprep.subr.mxu0 0.0
        %1215 = vmatpush1.xpose.msra.mxu0 0.0
        %1216 = vmatprep.subr.mxu0 0.0
        %1217 = vmatpush1.xpose.msra.mxu0 0.0
        %1218 = vmatprep.subr.mxu0 0.0
        %1219 = vmatpush1.xpose.msra.mxu0 0.0
        %1220 = vmatprep.subr.mxu0 0.0
        %1221 = vmatpush1.xpose.msra.mxu0 0.0
        %1222 = vmatprep.subr.mxu0 0.0
        %1223 = vmatpush1.xpose.msra.mxu0 0.0
        %1224 = vmatprep.subr.mxu0 0.0
        %1225 = vmatpush1.xpose.msra.mxu0 0.0
        %1226 = vmatprep.subr.mxu0 0.0
        %1227 = vmatpush1.xpose.msra.mxu0 0.0
        %1228 = vmatprep.subr.mxu0 0.0
        %1229 = vmatpush1.xpose.msra.mxu0 0.0
        %1230 = vmatprep.mubr.f32.mxu0 0.0
        %1231 = vmatmul.mubr.f32.gmra.mrb[0].mxu0 %v1161
        %v1232 = vpop.f32.mrb[0].mxu0
        %v1233 = vadd.f32 0.0, %v1232
        %v1234 = vpop.f32.mrb[0].mxu0
        %1235 = vdwg.mxu0
        %v1237 = vsel %vm1007, %v865, 0
        %v1240 = vsel %vm1007, %v933, 0
        %1242 = vmatprep.subr.mxu0 0.0
        %1243 = vmatpush1.xpose.msra.mxu0 %v1240
        %1244 = vmatprep.subr.mxu0 0.0
        %1245 = vmatpush1.xpose.msra.mxu0 0.0
        %1246 = vmatprep.subr.mxu0 0.0
        %1247 = vmatpush1.xpose.msra.mxu0 0.0
        %1248 = vmatprep.subr.mxu0 0.0
        %1249 = vmatpush1.xpose.msra.mxu0 0.0
        %1250 = vmatprep.subr.mxu0 0.0
        %1251 = vmatpush1.xpose.msra.mxu0 0.0
        %1252 = vmatprep.subr.mxu0 0.0
        %1253 = vmatpush1.xpose.msra.mxu0 0.0
        %1254 = vmatprep.subr.mxu0 0.0
        %1255 = vmatpush1.xpose.msra.mxu0 0.0
        %1256 = vmatprep.subr.mxu0 0.0
        %1257 = vmatpush1.xpose.msra.mxu0 0.0
        %1258 = vmatprep.subr.mxu0 0.0
        %1259 = vmatpush1.xpose.msra.mxu0 0.0
        %1260 = vmatprep.subr.mxu0 0.0
        %1261 = vmatpush1.xpose.msra.mxu0 0.0
        %1262 = vmatprep.subr.mxu0 0.0
        %1263 = vmatpush1.xpose.msra.mxu0 0.0
        %1264 = vmatprep.subr.mxu0 0.0
        %1265 = vmatpush1.xpose.msra.mxu0 0.0
        %1266 = vmatprep.subr.mxu0 0.0
        %1267 = vmatpush1.xpose.msra.mxu0 0.0
        %1268 = vmatprep.subr.mxu0 0.0
        %1269 = vmatpush1.xpose.msra.mxu0 0.0
        %1270 = vmatprep.subr.mxu0 0.0
        %1271 = vmatpush1.xpose.msra.mxu0 0.0
        %1272 = vmatprep.subr.mxu0 0.0
        %1273 = vmatpush1.xpose.msra.mxu0 0.0
        %1274 = vmatprep.subr.mxu0 0.0
        %1275 = vmatpush1.xpose.msra.mxu0 0.0
        %1276 = vmatprep.subr.mxu0 0.0
        %1277 = vmatpush1.xpose.msra.mxu0 0.0
        %1278 = vmatprep.subr.mxu0 0.0
        %1279 = vmatpush1.xpose.msra.mxu0 0.0
        %1280 = vmatprep.subr.mxu0 0.0
        %1281 = vmatpush1.xpose.msra.mxu0 0.0
        %1282 = vmatprep.subr.mxu0 0.0
        %1283 = vmatpush1.xpose.msra.mxu0 0.0
        %1284 = vmatprep.subr.mxu0 0.0
        %1285 = vmatpush1.xpose.msra.mxu0 0.0
        %1286 = vmatprep.subr.mxu0 0.0
        %1287 = vmatpush1.xpose.msra.mxu0 0.0
        %1288 = vmatprep.subr.mxu0 0.0
        %1289 = vmatpush1.xpose.msra.mxu0 0.0
        %1290 = vmatprep.subr.mxu0 0.0
        %1291 = vmatpush1.xpose.msra.mxu0 0.0
        %1292 = vmatprep.subr.mxu0 0.0
        %1293 = vmatpush1.xpose.msra.mxu0 0.0
        %1294 = vmatprep.subr.mxu0 0.0
        %1295 = vmatpush1.xpose.msra.mxu0 0.0
        %1296 = vmatprep.subr.mxu0 0.0
        %1297 = vmatpush1.xpose.msra.mxu0 0.0
        %1298 = vmatprep.subr.mxu0 0.0
        %1299 = vmatpush1.xpose.msra.mxu0 0.0
        %1300 = vmatprep.subr.mxu0 0.0
        %1301 = vmatpush1.xpose.msra.mxu0 0.0
        %1302 = vmatprep.subr.mxu0 0.0
        %1303 = vmatpush1.xpose.msra.mxu0 0.0
        %1304 = vmatprep.subr.mxu0 0.0
        %1305 = vmatpush1.xpose.msra.mxu0 0.0
        %1306 = vmatprep.mubr.f32.mxu0 0.0
        %1307 = vmatmul.mubr.f32.gmra.mrb[0].mxu0 %v1237
        %v1308 = vpop.f32.mrb[0].mxu0
        %v1309 = vadd.f32 0.0, %v1308
        %v1310 = vpop.f32.mrb[0].mxu0
        %1311 = vdwg.mxu0
        %v1312 = vsel %vm1006, 1, 0
        %vm1313 = vcmp.eq.s32.totalorder %v1312, 1
        %v1314 = vsel %vm1313, %v1081, -inf
        %v1315 = vsel %vm1313, %v1157, -inf
        %v1316 = vsel %vm1313, %v1233, -inf
        %v1317 = vsel %vm1313, %v1309, -inf
        %v1318 = vsel %vm1007, %v1314, -inf
        %1319 = vmax.xlane.f32.xlu0 %v1318
        %v1320 = vpop.xlane.xlu0 %1319
        %v1321 = vsel %vm1007, %v1315, -inf
        %1322 = vmax.xlane.f32.xlu0 %v1321
        %v1323 = vpop.xlane.xlu0 %1322
        %v1324 = vsel %vm1007, %v1316, -inf
        %1325 = vmax.xlane.f32.xlu0 %v1324
        %v1326 = vpop.xlane.xlu0 %1325
        %v1327 = vsel %vm1007, %v1317, -inf
        %1328 = vmax.xlane.f32.xlu0 %v1327
        %v1329 = vpop.xlane.xlu0 %1328
        %v1330 = vsub.f32 %v1314, %v1320
        %v1331 = vsub.f32 %v1315, %v1323
        %v1332 = vsub.f32 %v1316, %v1326
        %v1333 = vsub.f32 %v1317, %v1329
        %v1334 = vmul.f32 %v1330, 1.442695
        %v1335 = vpow.pop %v1334
        %v1336 = vmul.f32 %v1331, 1.442695
        %v1337 = vpow.pop %v1336
        %v1338 = vmul.f32 %v1332, 1.442695
        %v1339 = vpow.pop %v1338
        %v1340 = vmul.f32 %v1333, 1.442695
        %v1341 = vpow.pop %v1340
        %v1342 = vsel %vm1007, %v1335, 0.0
        %1343 = vadd.xlane.f32.xlu0 %v1342
        %v1344 = vpop.xlane.xlu0 %1343
        %v1345 = vsel %vm1007, %v1337, 0.0
        %1346 = vadd.xlane.f32.xlu0 %v1345
        %v1347 = vpop.xlane.xlu0 %1346
        %v1348 = vsel %vm1007, %v1339, 0.0
        %1349 = vadd.xlane.f32.xlu0 %v1348
        %v1350 = vpop.xlane.xlu0 %1349
        %v1351 = vsel %vm1007, %v1341, 0.0
        %1352 = vadd.xlane.f32.xlu0 %v1351
        %v1353 = vpop.xlane.xlu0 %1352
        %v1355 = vsel %vm1007, %v1335, 0
        %1357 = vmatprep.subr.mxu0 0.0
        %1358 = vmatpush1.msra.mxu0 %v998
        %1359 = vmatprep.subr.mxu0 0.0
        %1360 = vmatpush1.msra.mxu0 0.0
        %1361 = vmatprep.subr.mxu0 0.0
        %1362 = vmatpush1.msra.mxu0 0.0
        %1363 = vmatprep.subr.mxu0 0.0
        %1364 = vmatpush1.msra.mxu0 0.0
        %1365 = vmatprep.subr.mxu0 0.0
        %1366 = vmatpush1.msra.mxu0 0.0
        %1367 = vmatprep.subr.mxu0 0.0
        %1368 = vmatpush1.msra.mxu0 0.0
        %1369 = vmatprep.subr.mxu0 0.0
        %1370 = vmatpush1.msra.mxu0 0.0
        %1371 = vmatprep.subr.mxu0 0.0
        %1372 = vmatpush1.msra.mxu0 0.0
        %1373 = vmatprep.subr.mxu0 0.0
        %1374 = vmatpush1.msra.mxu0 0.0
        %1375 = vmatprep.subr.mxu0 0.0
        %1376 = vmatpush1.msra.mxu0 0.0
        %1377 = vmatprep.subr.mxu0 0.0
        %1378 = vmatpush1.msra.mxu0 0.0
        %1379 = vmatprep.subr.mxu0 0.0
        %1380 = vmatpush1.msra.mxu0 0.0
        %1381 = vmatprep.subr.mxu0 0.0
        %1382 = vmatpush1.msra.mxu0 0.0
        %1383 = vmatprep.subr.mxu0 0.0
        %1384 = vmatpush1.msra.mxu0 0.0
        %1385 = vmatprep.subr.mxu0 0.0
        %1386 = vmatpush1.msra.mxu0 0.0
        %1387 = vmatprep.subr.mxu0 0.0
        %1388 = vmatpush1.msra.mxu0 0.0
        %1389 = vmatprep.subr.mxu0 0.0
        %1390 = vmatpush1.msra.mxu0 0.0
        %1391 = vmatprep.subr.mxu0 0.0
        %1392 = vmatpush1.msra.mxu0 0.0
        %1393 = vmatprep.subr.mxu0 0.0
        %1394 = vmatpush1.msra.mxu0 0.0
        %1395 = vmatprep.subr.mxu0 0.0
        %1396 = vmatpush1.msra.mxu0 0.0
        %1397 = vmatprep.subr.mxu0 0.0
        %1398 = vmatpush1.msra.mxu0 0.0
        %1399 = vmatprep.subr.mxu0 0.0
        %1400 = vmatpush1.msra.mxu0 0.0
        %1401 = vmatprep.subr.mxu0 0.0
        %1402 = vmatpush1.msra.mxu0 0.0
        %1403 = vmatprep.subr.mxu0 0.0
        %1404 = vmatpush1.msra.mxu0 0.0
        %1405 = vmatprep.subr.mxu0 0.0
        %1406 = vmatpush1.msra.mxu0 0.0
        %1407 = vmatprep.subr.mxu0 0.0
        %1408 = vmatpush1.msra.mxu0 0.0
        %1409 = vmatprep.subr.mxu0 0.0
        %1410 = vmatpush1.msra.mxu0 0.0
        %1411 = vmatprep.subr.mxu0 0.0
        %1412 = vmatpush1.msra.mxu0 0.0
        %1413 = vmatprep.subr.mxu0 0.0
        %1414 = vmatpush1.msra.mxu0 0.0
        %1415 = vmatprep.subr.mxu0 0.0
        %1416 = vmatpush1.msra.mxu0 0.0
        %1417 = vmatprep.subr.mxu0 0.0
        %1418 = vmatpush1.msra.mxu0 0.0
        %1419 = vmatprep.subr.mxu0 0.0
        %1420 = vmatpush1.msra.mxu0 0.0
        %1421 = vmatprep.mubr.f32.mxu0 0.0
        %1422 = vmatmul.mubr.f32.gmra.mrb[0].mxu0 %v1355
        %v1423 = vpop.f32.mrb[0].mxu0
        %v1424 = vadd.f32 0.0, %v1423
        %v1425 = vpop.f32.mrb[0].mxu0
        %1426 = vdwg.mxu0
        %v1428 = vsel %vm1007, %v1337, 0
        %1430 = vmatprep.subr.mxu0 0.0
        %1431 = vmatpush1.msra.mxu0 %v999
        %1432 = vmatprep.subr.mxu0 0.0
        %1433 = vmatpush1.msra.mxu0 0.0
        %1434 = vmatprep.subr.mxu0 0.0
        %1435 = vmatpush1.msra.mxu0 0.0
        %1436 = vmatprep.subr.mxu0 0.0
        %1437 = vmatpush1.msra.mxu0 0.0
        %1438 = vmatprep.subr.mxu0 0.0
        %1439 = vmatpush1.msra.mxu0 0.0
        %1440 = vmatprep.subr.mxu0 0.0
        %1441 = vmatpush1.msra.mxu0 0.0
        %1442 = vmatprep.subr.mxu0 0.0
        %1443 = vmatpush1.msra.mxu0 0.0
        %1444 = vmatprep.subr.mxu0 0.0
        %1445 = vmatpush1.msra.mxu0 0.0
        %1446 = vmatprep.subr.mxu0 0.0
        %1447 = vmatpush1.msra.mxu0 0.0
        %1448 = vmatprep.subr.mxu0 0.0
        %1449 = vmatpush1.msra.mxu0 0.0
        %1450 = vmatprep.subr.mxu0 0.0
        %1451 = vmatpush1.msra.mxu0 0.0
        %1452 = vmatprep.subr.mxu0 0.0
        %1453 = vmatpush1.msra.mxu0 0.0
        %1454 = vmatprep.subr.mxu0 0.0
        %1455 = vmatpush1.msra.mxu0 0.0
        %1456 = vmatprep.subr.mxu0 0.0
        %1457 = vmatpush1.msra.mxu0 0.0
        %1458 = vmatprep.subr.mxu0 0.0
        %1459 = vmatpush1.msra.mxu0 0.0
        %1460 = vmatprep.subr.mxu0 0.0
        %1461 = vmatpush1.msra.mxu0 0.0
        %1462 = vmatprep.subr.mxu0 0.0
        %1463 = vmatpush1.msra.mxu0 0.0
        %1464 = vmatprep.subr.mxu0 0.0
        %1465 = vmatpush1.msra.mxu0 0.0
        %1466 = vmatprep.subr.mxu0 0.0
        %1467 = vmatpush1.msra.mxu0 0.0
        %1468 = vmatprep.subr.mxu0 0.0
        %1469 = vmatpush1.msra.mxu0 0.0
        %1470 = vmatprep.subr.mxu0 0.0
        %1471 = vmatpush1.msra.mxu0 0.0
        %1472 = vmatprep.subr.mxu0 0.0
        %1473 = vmatpush1.msra.mxu0 0.0
        %1474 = vmatprep.subr.mxu0 0.0
        %1475 = vmatpush1.msra.mxu0 0.0
        %1476 = vmatprep.subr.mxu0 0.0
        %1477 = vmatpush1.msra.mxu0 0.0
        %1478 = vmatprep.subr.mxu0 0.0
        %1479 = vmatpush1.msra.mxu0 0.0
        %1480 = vmatprep.subr.mxu0 0.0
        %1481 = vmatpush1.msra.mxu0 0.0
        %1482 = vmatprep.subr.mxu0 0.0
        %1483 = vmatpush1.msra.mxu0 0.0
        %1484 = vmatprep.subr.mxu0 0.0
        %1485 = vmatpush1.msra.mxu0 0.0
        %1486 = vmatprep.subr.mxu0 0.0
        %1487 = vmatpush1.msra.mxu0 0.0
        %1488 = vmatprep.subr.mxu0 0.0
        %1489 = vmatpush1.msra.mxu0 0.0
        %1490 = vmatprep.subr.mxu0 0.0
        %1491 = vmatpush1.msra.mxu0 0.0
        %1492 = vmatprep.subr.mxu0 0.0
        %1493 = vmatpush1.msra.mxu0 0.0
        %1494 = vmatprep.mubr.f32.mxu0 0.0
        %1495 = vmatmul.mubr.f32.gmra.mrb[0].mxu0 %v1428
        %v1496 = vpop.f32.mrb[0].mxu0
        %v1497 = vadd.f32 0.0, %v1496
        %v1498 = vpop.f32.mrb[0].mxu0
        %1499 = vdwg.mxu0
        %v1501 = vsel %vm1007, %v1339, 0
        %1503 = vmatprep.subr.mxu0 0.0
        %1504 = vmatpush1.msra.mxu0 %v1000
        %1505 = vmatprep.subr.mxu0 0.0
        %1506 = vmatpush1.msra.mxu0 0.0
        %1507 = vmatprep.subr.mxu0 0.0
        %1508 = vmatpush1.msra.mxu0 0.0
        %1509 = vmatprep.subr.mxu0 0.0
        %1510 = vmatpush1.msra.mxu0 0.0
        %1511 = vmatprep.subr.mxu0 0.0
        %1512 = vmatpush1.msra.mxu0 0.0
        %1513 = vmatprep.subr.mxu0 0.0
        %1514 = vmatpush1.msra.mxu0 0.0
        %1515 = vmatprep.subr.mxu0 0.0
        %1516 = vmatpush1.msra.mxu0 0.0
        %1517 = vmatprep.subr.mxu0 0.0
        %1518 = vmatpush1.msra.mxu0 0.0
        %1519 = vmatprep.subr.mxu0 0.0
        %1520 = vmatpush1.msra.mxu0 0.0
        %1521 = vmatprep.subr.mxu0 0.0
        %1522 = vmatpush1.msra.mxu0 0.0
        %1523 = vmatprep.subr.mxu0 0.0
        %1524 = vmatpush1.msra.mxu0 0.0
        %1525 = vmatprep.subr.mxu0 0.0
        %1526 = vmatpush1.msra.mxu0 0.0
        %1527 = vmatprep.subr.mxu0 0.0
        %1528 = vmatpush1.msra.mxu0 0.0
        %1529 = vmatprep.subr.mxu0 0.0
        %1530 = vmatpush1.msra.mxu0 0.0
        %1531 = vmatprep.subr.mxu0 0.0
        %1532 = vmatpush1.msra.mxu0 0.0
        %1533 = vmatprep.subr.mxu0 0.0
        %1534 = vmatpush1.msra.mxu0 0.0
        %1535 = vmatprep.subr.mxu0 0.0
        %1536 = vmatpush1.msra.mxu0 0.0
        %1537 = vmatprep.subr.mxu0 0.0
        %1538 = vmatpush1.msra.mxu0 0.0
        %1539 = vmatprep.subr.mxu0 0.0
        %1540 = vmatpush1.msra.mxu0 0.0
        %1541 = vmatprep.subr.mxu0 0.0
        %1542 = vmatpush1.msra.mxu0 0.0
        %1543 = vmatprep.subr.mxu0 0.0
        %1544 = vmatpush1.msra.mxu0 0.0
        %1545 = vmatprep.subr.mxu0 0.0
        %1546 = vmatpush1.msra.mxu0 0.0
        %1547 = vmatprep.subr.mxu0 0.0
        %1548 = vmatpush1.msra.mxu0 0.0
        %1549 = vmatprep.subr.mxu0 0.0
        %1550 = vmatpush1.msra.mxu0 0.0
        %1551 = vmatprep.subr.mxu0 0.0
        %1552 = vmatpush1.msra.mxu0 0.0
        %1553 = vmatprep.subr.mxu0 0.0
        %1554 = vmatpush1.msra.mxu0 0.0
        %1555 = vmatprep.subr.mxu0 0.0
        %1556 = vmatpush1.msra.mxu0 0.0
        %1557 = vmatprep.subr.mxu0 0.0
        %1558 = vmatpush1.msra.mxu0 0.0
        %1559 = vmatprep.subr.mxu0 0.0
        %1560 = vmatpush1.msra.mxu0 0.0
        %1561 = vmatprep.subr.mxu0 0.0
        %1562 = vmatpush1.msra.mxu0 0.0
        %1563 = vmatprep.subr.mxu0 0.0
        %1564 = vmatpush1.msra.mxu0 0.0
        %1565 = vmatprep.subr.mxu0 0.0
        %1566 = vmatpush1.msra.mxu0 0.0
        %1567 = vmatprep.mubr.f32.mxu0 0.0
        %1568 = vmatmul.mubr.f32.gmra.mrb[0].mxu0 %v1501
        %v1569 = vpop.f32.mrb[0].mxu0
        %v1570 = vadd.f32 0.0, %v1569
        %v1571 = vpop.f32.mrb[0].mxu0
        %1572 = vdwg.mxu0
        %v1574 = vsel %vm1007, %v1341, 0
        %1576 = vmatprep.subr.mxu0 0.0
        %1577 = vmatpush1.msra.mxu0 %v1001
        %1578 = vmatprep.subr.mxu0 0.0
        %1579 = vmatpush1.msra.mxu0 0.0
        %1580 = vmatprep.subr.mxu0 0.0
        %1581 = vmatpush1.msra.mxu0 0.0
        %1582 = vmatprep.subr.mxu0 0.0
        %1583 = vmatpush1.msra.mxu0 0.0
        %1584 = vmatprep.subr.mxu0 0.0
        %1585 = vmatpush1.msra.mxu0 0.0
        %1586 = vmatprep.subr.mxu0 0.0
        %1587 = vmatpush1.msra.mxu0 0.0
        %1588 = vmatprep.subr.mxu0 0.0
        %1589 = vmatpush1.msra.mxu0 0.0
        %1590 = vmatprep.subr.mxu0 0.0
        %1591 = vmatpush1.msra.mxu0 0.0
        %1592 = vmatprep.subr.mxu0 0.0
        %1593 = vmatpush1.msra.mxu0 0.0
        %1594 = vmatprep.subr.mxu0 0.0
        %1595 = vmatpush1.msra.mxu0 0.0
        %1596 = vmatprep.subr.mxu0 0.0
        %1597 = vmatpush1.msra.mxu0 0.0
        %1598 = vmatprep.subr.mxu0 0.0
        %1599 = vmatpush1.msra.mxu0 0.0
        %1600 = vmatprep.subr.mxu0 0.0
        %1601 = vmatpush1.msra.mxu0 0.0
        %1602 = vmatprep.subr.mxu0 0.0
        %1603 = vmatpush1.msra.mxu0 0.0
        %1604 = vmatprep.subr.mxu0 0.0
        %1605 = vmatpush1.msra.mxu0 0.0
        %1606 = vmatprep.subr.mxu0 0.0
        %1607 = vmatpush1.msra.mxu0 0.0
        %1608 = vmatprep.subr.mxu0 0.0
        %1609 = vmatpush1.msra.mxu0 0.0
        %1610 = vmatprep.subr.mxu0 0.0
        %1611 = vmatpush1.msra.mxu0 0.0
        %1612 = vmatprep.subr.mxu0 0.0
        %1613 = vmatpush1.msra.mxu0 0.0
        %1614 = vmatprep.subr.mxu0 0.0
        %1615 = vmatpush1.msra.mxu0 0.0
        %1616 = vmatprep.subr.mxu0 0.0
        %1617 = vmatpush1.msra.mxu0 0.0
        %1618 = vmatprep.subr.mxu0 0.0
        %1619 = vmatpush1.msra.mxu0 0.0
        %1620 = vmatprep.subr.mxu0 0.0
        %1621 = vmatpush1.msra.mxu0 0.0
        %1622 = vmatprep.subr.mxu0 0.0
        %1623 = vmatpush1.msra.mxu0 0.0
        %1624 = vmatprep.subr.mxu0 0.0
        %1625 = vmatpush1.msra.mxu0 0.0
        %1626 = vmatprep.subr.mxu0 0.0
        %1627 = vmatpush1.msra.mxu0 0.0
        %1628 = vmatprep.subr.mxu0 0.0
        %1629 = vmatpush1.msra.mxu0 0.0
        %1630 = vmatprep.subr.mxu0 0.0
        %1631 = vmatpush1.msra.mxu0 0.0
        %1632 = vmatprep.subr.mxu0 0.0
        %1633 = vmatpush1.msra.mxu0 0.0
        %1634 = vmatprep.subr.mxu0 0.0
        %1635 = vmatpush1.msra.mxu0 0.0
        %1636 = vmatprep.subr.mxu0 0.0
        %1637 = vmatpush1.msra.mxu0 0.0
        %1638 = vmatprep.subr.mxu0 0.0
        %1639 = vmatpush1.msra.mxu0 0.0
        %1640 = vmatprep.mubr.f32.mxu0 0.0
        %1641 = vmatmul.mubr.f32.gmra.mrb[0].mxu0 %v1574
        %v1642 = vpop.f32.mrb[0].mxu0
        %v1643 = vadd.f32 0.0, %v1642
        %v1644 = vpop.f32.mrb[0].mxu0
        %1645 = vdwg.mxu0
        %v1646 = vrcp.pop %v1344
        %v1647 = vrcp.pop %v1347
        %v1648 = vrcp.pop %v1350
        %v1649 = vrcp.pop %v1353
        %v1650 = vmul.f32 %v1424, %v1646
        %v1651 = vmul.f32 %v1497, %v1647
        %v1652 = vmul.f32 %v1570, %v1648
        %v1653 = vmul.f32 %v1643, %v1649
        %v1654 = vcombine.low %v1650, %v1652
        %v1655 = vcombine.high %v1650, %v1652
        %v1657 = vunpack.c.l.s4 1983009808
        %v1658 = vunpack.c.0.s8 %v1657
        %v1659 = vlaneseq
        %v1660 = vshrl.u32 %v1659, 7
        %v1661 = vsub.s32 %v1658, %v1660
        %v1662 = vrot.slane %v1654, %v1661
        %v1664 = vunpack.c.l.s4 1983009808
        %v1665 = vunpack.c.0.s8 %v1664
        %v1666 = vlaneseq
        %v1667 = vshrl.u32 %v1666, 7
        %v1668 = vsub.s32 %v1665, %v1667
        %v1669 = vrot.slane %v1655, %v1668
        %v1670 = vcombine.low %v1651, %v1653
        %v1671 = vcombine.high %v1651, %v1653
        %v1673 = vunpack.c.l.s4 1983009808
        %v1674 = vunpack.c.0.s8 %v1673
        %v1675 = vlaneseq
        %v1676 = vshrl.u32 %v1675, 7
        %v1677 = vsub.s32 %v1674, %v1676
        %v1678 = vrot.slane %v1670, %v1677
        %v1680 = vunpack.c.l.s4 1983009808
        %v1681 = vunpack.c.0.s8 %v1680
        %v1682 = vlaneseq
        %v1683 = vshrl.u32 %v1682, 7
        %v1684 = vsub.s32 %v1681, %v1683
        %v1685 = vrot.slane %v1671, %v1684
        %v1686 = vcombine.low %v1662, %v1678
        %v1687 = vcombine.high %v1662, %v1678
        %v1689 = vunpack.c.l.s4 1934713408
        %v1690 = vunpack.c.0.s8 %v1689
        %v1691 = vlaneseq
        %v1692 = vshrl.u32 %v1691, 7
        %v1693 = vsub.s32 %v1690, %v1692
        %v1694 = vrot.slane %v1686, %v1693
        %v1696 = vunpack.c.l.s4 1934713408
        %v1697 = vunpack.c.0.s8 %v1696
        %v1698 = vlaneseq
        %v1699 = vshrl.u32 %v1698, 7
        %v1700 = vsub.s32 %v1697, %v1699
        %v1701 = vrot.slane %v1687, %v1700
        %v1702 = vcombine.low %v1669, %v1685
        %v1703 = vcombine.high %v1669, %v1685
        %v1705 = vunpack.c.l.s4 1934713408
        %v1706 = vunpack.c.0.s8 %v1705
        %v1707 = vlaneseq
        %v1708 = vshrl.u32 %v1707, 7
        %v1709 = vsub.s32 %v1706, %v1708
        %v1710 = vrot.slane %v1702, %v1709
        %v1712 = vunpack.c.l.s4 1934713408
        %v1713 = vunpack.c.0.s8 %v1712
        %v1714 = vlaneseq
        %v1715 = vshrl.u32 %v1714, 7
        %v1716 = vsub.s32 %v1713, %v1715
        %v1717 = vrot.slane %v1703, %v1716
        %v1718 = vcombine.high %v1694, 0.0
        %v1719 = vcombine.high %v1701, 0.0
        %v1720 = vcombine.high %v1710, 0.0
        %v1721 = vcombine.high %v1717, 0.0
        %v1722 = vcombine.low %v1694, %v1701
        %v1724 = vunpack.c.l.s4 1983009808
        %v1725 = vunpack.c.0.s8 %v1724
        %v1726 = vlaneseq
        %v1727 = vshrl.u32 %v1726, 7
        %v1728 = vsub.s32 %v1725, %v1727
        %v1729 = vrot.slane %v1722, %v1728
        %v1730 = vcombine.low %v1718, %v1719
        %v1732 = vunpack.c.l.s4 1983009808
        %v1733 = vunpack.c.0.s8 %v1732
        %v1734 = vlaneseq
        %v1735 = vshrl.u32 %v1734, 7
        %v1736 = vsub.s32 %v1733, %v1735
        %v1737 = vrot.slane %v1730, %v1736
        %v1738 = vcombine.low %v1710, %v1717
        %v1740 = vunpack.c.l.s4 1983009808
        %v1741 = vunpack.c.0.s8 %v1740
        %v1742 = vlaneseq
        %v1743 = vshrl.u32 %v1742, 7
        %v1744 = vsub.s32 %v1741, %v1743
        %v1745 = vrot.slane %v1738, %v1744
        %v1746 = vcombine.low %v1720, %v1721
        %v1748 = vunpack.c.l.s4 1983009808
        %v1749 = vunpack.c.0.s8 %v1748
        %v1750 = vlaneseq
        %v1751 = vshrl.u32 %v1750, 7
        %v1752 = vsub.s32 %v1749, %v1751
        %v1753 = vrot.slane %v1746, %v1752
        %v1754 = vcombine.low %v1729, %v1737
        %v1755 = vcombine.high %v1729, %v1737
        %v1757 = vunpack.c.l.s4 1934713408
        %v1758 = vunpack.c.0.s8 %v1757
        %v1759 = vlaneseq
        %v1760 = vshrl.u32 %v1759, 7
        %v1761 = vsub.s32 %v1758, %v1760
        %v1762 = vrot.slane %v1754, %v1761
        %v1764 = vunpack.c.l.s4 1934713408
        %v1765 = vunpack.c.0.s8 %v1764
        %v1766 = vlaneseq
        %v1767 = vshrl.u32 %v1766, 7
        %v1768 = vsub.s32 %v1765, %v1767
        %v1769 = vrot.slane %v1755, %v1768
        %v1770 = vcombine.low %v1745, %v1753
        %v1771 = vcombine.high %v1745, %v1753
        %v1773 = vunpack.c.l.s4 1934713408
        %v1774 = vunpack.c.0.s8 %v1773
        %v1775 = vlaneseq
        %v1776 = vshrl.u32 %v1775, 7
        %v1777 = vsub.s32 %v1774, %v1776
        %v1778 = vrot.slane %v1770, %v1777
        %v1780 = vunpack.c.l.s4 1934713408
        %v1781 = vunpack.c.0.s8 %v1780
        %v1782 = vlaneseq
        %v1783 = vshrl.u32 %v1782, 7
        %v1784 = vsub.s32 %v1781, %v1783
        %v1785 = vrot.slane %v1771, %v1784
        %v1786 = vcombine.low %v1762, %v1778
        %v1787 = vcombine.high %v1762, %v1778
        %v1788 = vcombine.low %v1769, %v1785
        %v1789 = vcombine.high %v1769, %v1785
        %1791 = vrot.lane.b32.xlu0 %v1787, 8
        %v1792 = vpop.permute.xlu0 %1791
        %1795 = vrot.lane.b32.xlu0 %v1788, 16
        %v1796 = vpop.permute.xlu0 %1795
        %1799 = vrot.lane.b32.xlu0 %v1789, 24
        %v1800 = vpop.permute.xlu0 %1799
        %v1802 = vsel %vm1007, %v1786, %v1792
        %vm1803 = vcmask 130048
        %v1804 = vsel %vm1803, %v1802, %v1796
        %vm1805 = vcmask 195584
        %v1806 = vsel %vm1805, %v1804, %v1800
        %v1807 = vld [vmem:[%s5] sm:$0xff]
        %v1808 = vld [vmem:[%s5 + $0x8] sm:$0xff]
        %v1809 = vld [vmem:[%s5 + $0x10] sm:$0xff]
        %v1810 = vld [vmem:[%s5 + $0x18] sm:$0xff]
        %v1811 = vld [vmem:[%s6] sm:$0x1]
        %v1813 = vlaneseq
        %v1814 = vshrl.u32 %v1813, 7
        %v1815 = vsub.s32 0, %v1814
        %v1816 = vrot.slane %v1811, %v1815
        %v1819 = vsel %vm439, %v1806, 0
        %1821 = vmatprep.subr.mxu0 0.0
        %1822 = vmatpush1.msra.mxu0 %v1807
        %1823 = vmatprep.subr.mxu0 0.0
        %1824 = vmatpush1.msra.mxu0 %v1808
        %1825 = vmatprep.subr.mxu0 0.0
        %1826 = vmatpush1.msra.mxu0 %v1809
        %1827 = vmatprep.subr.mxu0 0.0
        %1828 = vmatpush1.msra.mxu0 %v1810
        %1829 = vmatprep.subr.mxu0 0.0
        %1830 = vmatpush1.msra.mxu0 0.0
        %1831 = vmatprep.subr.mxu0 0.0
        %1832 = vmatpush1.msra.mxu0 0.0
        %1833 = vmatprep.subr.mxu0 0.0
        %1834 = vmatpush1.msra.mxu0 0.0
        %1835 = vmatprep.subr.mxu0 0.0
        %1836 = vmatpush1.msra.mxu0 0.0
        %1837 = vmatprep.subr.mxu0 0.0
        %1838 = vmatpush1.msra.mxu0 0.0
        %1839 = vmatprep.subr.mxu0 0.0
        %1840 = vmatpush1.msra.mxu0 0.0
        %1841 = vmatprep.subr.mxu0 0.0
        %1842 = vmatpush1.msra.mxu0 0.0
        %1843 = vmatprep.subr.mxu0 0.0
        %1844 = vmatpush1.msra.mxu0 0.0
        %1845 = vmatprep.subr.mxu0 0.0
        %1846 = vmatpush1.msra.mxu0 0.0
        %1847 = vmatprep.subr.mxu0 0.0
        %1848 = vmatpush1.msra.mxu0 0.0
        %1849 = vmatprep.subr.mxu0 0.0
        %1850 = vmatpush1.msra.mxu0 0.0
        %1851 = vmatprep.subr.mxu0 0.0
        %1852 = vmatpush1.msra.mxu0 0.0
        %1853 = vmatprep.subr.mxu0 0.0
        %1854 = vmatpush1.msra.mxu0 0.0
        %1855 = vmatprep.subr.mxu0 0.0
        %1856 = vmatpush1.msra.mxu0 0.0
        %1857 = vmatprep.subr.mxu0 0.0
        %1858 = vmatpush1.msra.mxu0 0.0
        %1859 = vmatprep.subr.mxu0 0.0
        %1860 = vmatpush1.msra.mxu0 0.0
        %1861 = vmatprep.subr.mxu0 0.0
        %1862 = vmatpush1.msra.mxu0 0.0
        %1863 = vmatprep.subr.mxu0 0.0
        %1864 = vmatpush1.msra.mxu0 0.0
        %1865 = vmatprep.subr.mxu0 0.0
        %1866 = vmatpush1.msra.mxu0 0.0
        %1867 = vmatprep.subr.mxu0 0.0
        %1868 = vmatpush1.msra.mxu0 0.0
        %1869 = vmatprep.subr.mxu0 0.0
        %1870 = vmatpush1.msra.mxu0 0.0
        %1871 = vmatprep.subr.mxu0 0.0
        %1872 = vmatpush1.msra.mxu0 0.0
        %1873 = vmatprep.subr.mxu0 0.0
        %1874 = vmatpush1.msra.mxu0 0.0
        %1875 = vmatprep.subr.mxu0 0.0
        %1876 = vmatpush1.msra.mxu0 0.0
        %1877 = vmatprep.subr.mxu0 0.0
        %1878 = vmatpush1.msra.mxu0 0.0
        %1879 = vmatprep.subr.mxu0 0.0
        %1880 = vmatpush1.msra.mxu0 0.0
        %1881 = vmatprep.subr.mxu0 0.0
        %1882 = vmatpush1.msra.mxu0 0.0
        %1883 = vmatprep.subr.mxu0 0.0
        %1884 = vmatpush1.msra.mxu0 0.0
        %1885 = vmatprep.mubr.f32.mxu0 0.0
        %1886 = vmatmul.mubr.f32.gmra.mrb[0].mxu0 %v1819
        %v1887 = vpop.f32.mrb[0].mxu0
        %v1888 = vadd.f32 %v1816, %v1887
        %v1889 = vpop.f32.mrb[0].mxu0
        %1890 = vdwg.mxu0
        %v1891 = vadd.f32 %v436, %v1888
        %v1892 = vld [vmem:[%s7] sm:$0x1]
        %v1893 = vld [vmem:[%s8] sm:$0x1]
        %v1894 = vsel %vm439, %v1891, 0.0
        %1895 = vadd.xlane.f32.xlu0 %v1894
        %v1896 = vpop.xlane.xlu0 %1895
        %v1897 = vmul.f32 %v1896, %v443
        %v1898 = vsub.f32 %v1891, %v1897
        %v1899 = vmul.f32 %v1898, %v1898
        %v1900 = vsel %vm439, %v1899, 0.0
        %1901 = vadd.xlane.f32.xlu0 %v1900
        %v1902 = vpop.xlane.xlu0 %1901
        %v1903 = vmul.f32 %v1902, %v443
        %v1904 = vadd.f32 %v1903, 1e-05
        %v1905 = vrsqrt.pop %v1904
        %v1906 = vmul.f32 %v1898, %v1905
        %v1908 = vlaneseq
        %v1909 = vshrl.u32 %v1908, 7
        %v1910 = vsub.s32 0, %v1909
        %v1911 = vrot.slane %v1892, %v1910
        %v1913 = vmul.f32 %v1906, %v1911
        %v1915 = vlaneseq
        %v1916 = vshrl.u32 %v1915, 7
        %v1917 = vsub.s32 0, %v1916
        %v1918 = vrot.slane %v1893, %v1917
        %v1920 = vadd.f32 %v1913, %v1918
        %v1921 = vld [vmem:[%s9] sm:$0xff]
        %v1922 = vld [vmem:[%s9 + $0x8] sm:$0xff]
        %v1923 = vld [vmem:[%s9 + $0x10] sm:$0xff]
        %v1924 = vld [vmem:[%s9 + $0x18] sm:$0xff]
        %v1925 = vld [vmem:[%s10] sm:$0x1]
        %v1927 = vlaneseq
        %v1928 = vshrl.u32 %v1927, 7
        %v1929 = vsub.s32 0, %v1928
        %v1930 = vrot.slane %v1925, %v1929
        %v1933 = vsel %vm439, %v1920, 0
        %1935 = vmatprep.subr.mxu0 0.0
        %1936 = vmatpush1.msra.mxu0 %v1921
        %1937 = vmatprep.subr.mxu0 0.0
        %1938 = vmatpush1.msra.mxu0 %v1922
        %1939 = vmatprep.subr.mxu0 0.0
        %1940 = vmatpush1.msra.mxu0 %v1923
        %1941 = vmatprep.subr.mxu0 0.0
        %1942 = vmatpush1.msra.mxu0 %v1924
        %1943 = vmatprep.subr.mxu0 0.0
        %1944 = vmatpush1.msra.mxu0 0.0
        %1945 = vmatprep.subr.mxu0 0.0
        %1946 = vmatpush1.msra.mxu0 0.0
        %1947 = vmatprep.subr.mxu0 0.0
        %1948 = vmatpush1.msra.mxu0 0.0
        %1949 = vmatprep.subr.mxu0 0.0
        %1950 = vmatpush1.msra.mxu0 0.0
        %1951 = vmatprep.subr.mxu0 0.0
        %1952 = vmatpush1.msra.mxu0 0.0
        %1953 = vmatprep.subr.mxu0 0.0
        %1954 = vmatpush1.msra.mxu0 0.0
        %1955 = vmatprep.subr.mxu0 0.0
        %1956 = vmatpush1.msra.mxu0 0.0
        %1957 = vmatprep.subr.mxu0 0.0
        %1958 = vmatpush1.msra.mxu0 0.0
        %1959 = vmatprep.subr.mxu0 0.0
        %1960 = vmatpush1.msra.mxu0 0.0
        %1961 = vmatprep.subr.mxu0 0.0
        %1962 = vmatpush1.msra.mxu0 0.0
        %1963 = vmatprep.subr.mxu0 0.0
        %1964 = vmatpush1.msra.mxu0 0.0
        %1965 = vmatprep.subr.mxu0 0.0
        %1966 = vmatpush1.msra.mxu0 0.0
        %1967 = vmatprep.subr.mxu0 0.0
        %1968 = vmatpush1.msra.mxu0 0.0
        %1969 = vmatprep.subr.mxu0 0.0
        %1970 = vmatpush1.msra.mxu0 0.0
        %1971 = vmatprep.subr.mxu0 0.0
        %1972 = vmatpush1.msra.mxu0 0.0
        %1973 = vmatprep.subr.mxu0 0.0
        %1974 = vmatpush1.msra.mxu0 0.0
        %1975 = vmatprep.subr.mxu0 0.0
        %1976 = vmatpush1.msra.mxu0 0.0
        %1977 = vmatprep.subr.mxu0 0.0
        %1978 = vmatpush1.msra.mxu0 0.0
        %1979 = vmatprep.subr.mxu0 0.0
        %1980 = vmatpush1.msra.mxu0 0.0
        %1981 = vmatprep.subr.mxu0 0.0
        %1982 = vmatpush1.msra.mxu0 0.0
        %1983 = vmatprep.subr.mxu0 0.0
        %1984 = vmatpush1.msra.mxu0 0.0
        %1985 = vmatprep.subr.mxu0 0.0
        %1986 = vmatpush1.msra.mxu0 0.0
        %1987 = vmatprep.subr.mxu0 0.0
        %1988 = vmatpush1.msra.mxu0 0.0
        %1989 = vmatprep.subr.mxu0 0.0
        %1990 = vmatpush1.msra.mxu0 0.0
        %1991 = vmatprep.subr.mxu0 0.0
        %1992 = vmatpush1.msra.mxu0 0.0
        %1993 = vmatprep.subr.mxu0 0.0
        %1994 = vmatpush1.msra.mxu0 0.0
        %1995 = vmatprep.subr.mxu0 0.0
        %1996 = vmatpush1.msra.mxu0 0.0
        %1997 = vmatprep.subr.mxu0 0.0
        %1998 = vmatpush1.msra.mxu0 0.0
        %1999 = vmatprep.mubr.f32.mxu0 0.0
        %2000 = vmatmul.mubr.f32.gmra.mrb[0].mxu0 %v1933
        %v2001 = vpop.f32.mrb[0].mxu0
        %v2002 = vadd.f32 %v1930, %v2001
        %v2003 = vpop.f32.mrb[0].mxu0
        %2004 = vdwg.mxu0
        %v2005 = vmul.f32 %v2002, 0.5
        %v2006 = vmul.f32 %v2002, 0.044715
        %v2007 = vmul.f32 %v2006, %v2002
        %v2008 = vmul.f32 %v2007, %v2002
        %v2009 = vadd.f32 %v2002, %v2008
        %v2010 = vmul.f32 %v2009, 0.7978846
        %v2011 = vtanh.pop %v2010
        %v2012 = vadd.f32 %v2011, 1.0
        %v2013 = vmul.f32 %v2005, %v2012
        %v2014 = vld [vmem:[%s11] sm:$0xff]
        %v2015 = vld [vmem:[%s11 + $0x8] sm:$0xff]
        %v2016 = vld [vmem:[%s11 + $0x10] sm:$0xff]
        %v2017 = vld [vmem:[%s11 + $0x18] sm:$0xff]
        %v2018 = vld [vmem:[%s11 + $0x20] sm:$0xff]
        %v2019 = vld [vmem:[%s11 + $0x28] sm:$0xff]
        %v2020 = vld [vmem:[%s11 + $0x30] sm:$0xff]
        %v2021 = vld [vmem:[%s11 + $0x38] sm:$0xff]
        %v2022 = vld [vmem:[%s11 + $0x40] sm:$0xff]
        %v2023 = vld [vmem:[%s11 + $0x48] sm:$0xff]
        %v2024 = vld [vmem:[%s11 + $0x50] sm:$0xff]
        %v2025 = vld [vmem:[%s11 + $0x58] sm:$0xff]
        %v2026 = vld [vmem:[%s11 + $0x60] sm:$0xff]
        %v2027 = vld [vmem:[%s11 + $0x68] sm:$0xff]
        %v2028 = vld [vmem:[%s11 + $0x70] sm:$0xff]
        %v2029 = vld [vmem:[%s11 + $0x78] sm:$0xff]
        %v2030 = vld [vmem:[%s12] sm:$0x1]
        %v2032 = vlaneseq
        %v2033 = vshrl.u32 %v2032, 7
        %v2034 = vsub.s32 0, %v2033
        %v2035 = vrot.slane %v2030, %v2034
        %2037 = vmatprep.subr.mxu0 0.0
        %2038 = vmatpush1.msra.mxu0 %v2014
        %2039 = vmatprep.subr.mxu0 0.0
        %2040 = vmatpush1.msra.mxu0 %v2015
        %2041 = vmatprep.subr.mxu0 0.0
        %2042 = vmatpush1.msra.mxu0 %v2016
        %2043 = vmatprep.subr.mxu0 0.0
        %2044 = vmatpush1.msra.mxu0 %v2017
        %2045 = vmatprep.subr.mxu0 0.0
        %2046 = vmatpush1.msra.mxu0 %v2018
        %2047 = vmatprep.subr.mxu0 0.0
        %2048 = vmatpush1.msra.mxu0 %v2019
        %2049 = vmatprep.subr.mxu0 0.0
        %2050 = vmatpush1.msra.mxu0 %v2020
        %2051 = vmatprep.subr.mxu0 0.0
        %2052 = vmatpush1.msra.mxu0 %v2021
        %2053 = vmatprep.subr.mxu0 0.0
        %2054 = vmatpush1.msra.mxu0 %v2022
        %2055 = vmatprep.subr.mxu0 0.0
        %2056 = vmatpush1.msra.mxu0 %v2023
        %2057 = vmatprep.subr.mxu0 0.0
        %2058 = vmatpush1.msra.mxu0 %v2024
        %2059 = vmatprep.subr.mxu0 0.0
        %2060 = vmatpush1.msra.mxu0 %v2025
        %2061 = vmatprep.subr.mxu0 0.0
        %2062 = vmatpush1.msra.mxu0 %v2026
        %2063 = vmatprep.subr.mxu0 0.0
        %2064 = vmatpush1.msra.mxu0 %v2027
        %2065 = vmatprep.subr.mxu0 0.0
        %2066 = vmatpush1.msra.mxu0 %v2028
        %2067 = vmatprep.subr.mxu0 0.0
        %2068 = vmatpush1.msra.mxu0 %v2029
        %2069 = vmatprep.subr.mxu0 0.0
        %2070 = vmatpush1.msra.mxu0 0.0
        %2071 = vmatprep.subr.mxu0 0.0
        %2072 = vmatpush1.msra.mxu0 0.0
        %2073 = vmatprep.subr.mxu0 0.0
        %2074 = vmatpush1.msra.mxu0 0.0
        %2075 = vmatprep.subr.mxu0 0.0
        %2076 = vmatpush1.msra.mxu0 0.0
        %2077 = vmatprep.subr.mxu0 0.0
        %2078 = vmatpush1.msra.mxu0 0.0
        %2079 = vmatprep.subr.mxu0 0.0
        %2080 = vmatpush1.msra.mxu0 0.0
        %2081 = vmatprep.subr.mxu0 0.0
        %2082 = vmatpush1.msra.mxu0 0.0
        %2083 = vmatprep.subr.mxu0 0.0
        %2084 = vmatpush1.msra.mxu0 0.0
        %2085 = vmatprep.subr.mxu0 0.0
        %2086 = vmatpush1.msra.mxu0 0.0
        %2087 = vmatprep.subr.mxu0 0.0
        %2088 = vmatpush1.msra.mxu0 0.0
        %2089 = vmatprep.subr.mxu0 0.0
        %2090 = vmatpush1.msra.mxu0 0.0
        %2091 = vmatprep.subr.mxu0 0.0
        %2092 = vmatpush1.msra.mxu0 0.0
        %2093 = vmatprep.subr.mxu0 0.0
        %2094 = vmatpush1.msra.mxu0 0.0
        %2095 = vmatprep.subr.mxu0 0.0
        %2096 = vmatpush1.msra.mxu0 0.0
        %2097 = vmatprep.subr.mxu0 0.0
        %2098 = vmatpush1.msra.mxu0 0.0
        %2099 = vmatprep.subr.mxu0 0.0
        %2100 = vmatpush1.msra.mxu0 0.0
        %2101 = vmatprep.mubr.f32.mxu0 0.0
        %2102 = vmatmul.mubr.f32.gmra.mrb[0].mxu0 %v2013
        %v2103 = vpop.f32.mrb[0].mxu0
        %v2104 = vadd.f32 %v2035, %v2103
        %v2105 = vpop.f32.mrb[0].mxu0
        %2106 = vdwg.mxu0
        %v2107 = vadd.f32 %v1891, %v2104
        %2108 = vst.msk [vmem:[%s431] sm:$0xff] %vm439, %v2107
        %s2109 = sand.u32 %s313, 1
        %s2110 = scalar_lea.sflag [#allocation3], %s2109
        %s2111 = sand.u32 %s313, 1
        %s2112 = smul.addr %s2111, 8
        %s2113 = scalar_lea.vmem [#allocation2], %s2112
        // Predicated region
        $region73: #{tpu_custom_call.1} parent=71 // pred_check
          %p2114 = pneg %p323
        $region74: #{tpu_custom_call.1} parent=71 // pred_check_branch
          %2116 = sbr.rel (%p2114) target = $region76
        $region75: #{tpu_custom_call.1} parent=71 // pred_region
          %s2118 = ssub.s32 128, 128
          %2119 = vsyncadd %s2110, %s2118
          %s2120 = smul.addr %s27, 128
          %s2121 = scalar_lea.hbm %s13, %s2120
          %s2123 = sshll.u32 %s2113, 4
          %s2124 = int_to_ptr.vmem [resolvable:$true] %s2123
          %2126 = dma.vmem_to_hbm [thread:$0]  %s2124, 128, %s2121, %s2110
        $region76: #{tpu_custom_call.1} parent=71 // pred_fallthru
          _
      $region72: #{tpu_custom_call.1} parent=5 // pred_fallthru
        _
      %p2127 = scmp.le.s32.totalorder 2, %s22
      // Predicated region
      $region77: #{tpu_custom_call.1} parent=5 // pred_check
        %p2128 = pneg %p2127
      $region78: #{tpu_custom_call.1} parent=5 // pred_check_branch
        %2130 = sbr.rel (%p2128) target = $region80
      $region79: #{tpu_custom_call.1} parent=5 // pred_region
        %s2131 = ssub.s32 %s22, 2
        // Predicated region
        $region81: #{tpu_custom_call.1} parent=79 // pred_check
          %p2132 = pneg %p329
        $region82: #{tpu_custom_call.1} parent=79 // pred_check_branch
          %2134 = sbr.rel (%p2132) target = $region84
        $region83: #{tpu_custom_call.1} parent=79 // pred_region
          %s2135 = sand.u32 %s314, 1
          %s2136 = scalar_lea.sflag [#allocation3], %s2135
          %s2137 = sand.u32 %s314, 1
          %s2138 = smul.addr %s2137, 8
          %s2139 = scalar_lea.vmem [#allocation2], %s2138
          %2140 = dma.done %s2136, 128
        $region84: #{tpu_custom_call.1} parent=79 // pred_fallthru
          _
      $region80: #{tpu_custom_call.1} parent=5 // pred_fallthru
        _
    $region6: #{tpu_custom_call.1} parent=1 // loop_footer
      %s26 = sadd.s32 1, %s22
    $region7: #{tpu_custom_call.1} parent=1 // loop_footer_branch
      %21 = sbr.rel target = $region3
    $region8: #{tpu_custom_call.1} parent=1 // loop_exit
      _
    %2141 = vsyncpa [#allocation3], 1
    %s2142 = scalar_lea.sflag [#allocation3], 1
    %2143 = vsyncpa %s2142, 1

</llo_original>
